<compile_context>
chip_gen: v6e
topology: v6e:2x2x1
jax: 0.10.0
libtpu: 0.0.40
codegen_flags: <defaults>
</compile_context>

<pallas_src>
import functools
import math

import jax
import jax.numpy as jnp
from jax.experimental import pallas as pl
from jax.experimental.pallas import tpu as pltpu


# ----------------------------- in-kernel helpers -----------------------------

def _bf16_dot(a, b):
    """MXU matmul with bf16 operands and f32 accumulation."""
    return jnp.dot(a.astype(jnp.bfloat16), b.astype(jnp.bfloat16),
                   preferred_element_type=jnp.float32)


def _layernorm(y, g, b):
    mean = jnp.mean(y, axis=-1, keepdims=True)
    cent = y - mean
    var = jnp.mean(cent * cent, axis=-1, keepdims=True)
    return cent * jax.lax.rsqrt(var + 1e-5) * g + b


# ------------------------------- Pallas kernels -------------------------------

def _attn_block_kernel(*refs, n_heads, causal, is_self):
    """Fused MHA block for ONE batch element (grid axis = batch).

    Computes LayerNorm(x_q + MHA(x_q, x_kv)) with the 1/sqrt(Dh) scale already
    folded into the Q projection weights.
    """
    if is_self:
        (xq_ref, wqkv_ref, bqkv_ref, wo_ref, bo_ref, g_ref, bln_ref,
         o_ref) = refs
    else:
        (xq_ref, xkv_ref, wqkv_ref, bqkv_ref, wo_ref, bo_ref, g_ref, bln_ref,
         o_ref) = refs

    tq, d = xq_ref.shape
    dh = d // n_heads
    xq = xq_ref[...]                                            # (Tq, D) f32

    if is_self:
        # single fused QKV matmul
        qkv = _bf16_dot(xq, wqkv_ref[...]) + bqkv_ref[...]      # (Tq, 3D)
        q = qkv[:, 0:d]
        k = qkv[:, d:2 * d]
        v = qkv[:, 2 * d:3 * d]
        tk = tq
    else:
        xkv = xkv_ref[...]                                      # (Tk, D)
        tk = xkv_ref.shape[0]
        q = _bf16_dot(xq, wqkv_ref[:, 0:d]) + bqkv_ref[:, 0:d]
        kv = _bf16_dot(xkv, wqkv_ref[:, d:3 * d]) + bqkv_ref[:, d:3 * d]
        k = kv[:, 0:d]
        v = kv[:, d:2 * d]

    if causal:
        # causal mask generated in-kernel: no (B*H, T, T) float mask DMA.
        row = jax.lax.broadcasted_iota(jnp.int32, (tq, tk), 0)
        col = jax.lax.broadcasted_iota(jnp.int32, (tq, tk), 1)
        neg = jnp.where(col > row, -1e9, 0.0).astype(jnp.float32)

    # Per-head attention.  The output projection is applied per head-slab and
    # accumulated (concat_h(P_h V_h) @ Wo == sum_h P_h V_h Wo[h*Dh:(h+1)*Dh]),
    # which keeps the stored output lane-dense and avoids lane-dim concats.
    acc = jnp.zeros((tq, d), jnp.float32)
    for h in range(n_heads):
        sl = slice(h * dh, (h + 1) * dh)
        s = jax.lax.dot_general(                                # (Tq, Tk) f32
            q[:, sl].astype(jnp.bfloat16), k[:, sl].astype(jnp.bfloat16),
            (((1,), (1,)), ((), ())), preferred_element_type=jnp.float32)
        if causal:
            s = s + neg
        s = s - jnp.max(s, axis=-1, keepdims=True)
        p = jnp.exp(s)
        p = p * pl.reciprocal(jnp.sum(p, axis=-1, keepdims=True), approx=True)
        oh = _bf16_dot(p, v[:, sl])                             # (Tq, Dh)
        acc = acc + _bf16_dot(oh, wo_ref[sl, :])                # (Tq, D)

    y = xq + acc + bo_ref[...]                                  # residual
    o_ref[...] = _layernorm(y, g_ref[...], bln_ref[...])


def _ffn_block_kernel(x_ref, w1_ref, b1_ref, w2_ref, b2_ref, g_ref, bln_ref,
                      o_ref):
    """Fused FFN block for ONE batch element: LN(x + W2 relu(W1 x + b1) + b2)."""
    x = x_ref[...]                                              # (T, D)
    h = jnp.maximum(_bf16_dot(x, w1_ref[...]) + b1_ref[...], 0.0)   # (T, 4D)
    y = _bf16_dot(h, w2_ref[...]) + b2_ref[...]                 # (T, D)
    o_ref[...] = _layernorm(x + y, g_ref[...], bln_ref[...])


def _linear_softmax_kernel(x_ref, w_ref, b_ref, o_ref):
    """Final Linear(embed_dim, ff_dim) + softmax(dim=-1), fused."""
    y = _bf16_dot(x_ref[...], w_ref[...]) + b_ref[...]
    y = y - jnp.max(y, axis=-1, keepdims=True)
    e = jnp.exp(y)
    # exact reciprocal here so output rows sum to 1 within f32 rounding.
    o_ref[...] = e * pl.reciprocal(jnp.sum(e, axis=-1, keepdims=True),
                                   approx=False)


# ------------------------------ pallas_call wrappers ------------------------------

def _act_spec(t, d):
    # per-batch block: kernel sees a 2D (T, D) ref (leading dim squeezed).
    return pl.BlockSpec((None, t, d), lambda b: (b, 0, 0))


def _rep_spec(arr):
    # weights: full array, same block every grid step (no re-fetch).
    return pl.BlockSpec(arr.shape, lambda b: (0, 0))


def _cparams():
    # batch axis is independent work -> shard across v7x's 2 TensorCores.
    return pltpu.CompilerParams(dimension_semantics=("parallel",))


def attn_block(xq, xkv, ap, lnp, n_heads, *, causal, is_self):
    B, Tq, D = xq.shape
    Tk = xkv.shape[1]
    weights = (ap["wqkv"], ap["bqkv"], ap["wo"], ap["bo"], lnp["g"], lnp["b"])
    if is_self:
        inputs = (xq,) + weights
        in_specs = [_act_spec(Tq, D)] + [_rep_spec(w) for w in weights]
    else:
        inputs = (xq, xkv) + weights
        in_specs = ([_act_spec(Tq, D), _act_spec(Tk, D)]
                    + [_rep_spec(w) for w in weights])
    kernel = functools.partial(_attn_block_kernel, n_heads=n_heads,
                               causal=causal, is_self=is_self)
    return pl.pallas_call(
        kernel,
        out_shape=jax.ShapeDtypeStruct((B, Tq, D), jnp.float32),
        grid=(B,),
        in_specs=in_specs,
        out_specs=_act_spec(Tq, D),
        compiler_params=_cparams(),
    )(*inputs)


def ffn_block(x, fp, lnp):
    B, T, D = x.shape
    weights = (fp["w1"], fp["b1"], fp["w2"], fp["b2"], lnp["g"], lnp["b"])
    return pl.pallas_call(
        _ffn_block_kernel,
        out_shape=jax.ShapeDtypeStruct((B, T, D), jnp.float32),
        grid=(B,),
        in_specs=[_act_spec(T, D)] + [_rep_spec(w) for w in weights],
        out_specs=_act_spec(T, D),
        compiler_params=_cparams(),
    )(x, *weights)


def linear_softmax(x, op):
    B, T, D = x.shape
    N = op["w"].shape[1]
    return pl.pallas_call(
        _linear_softmax_kernel,
        out_shape=jax.ShapeDtypeStruct((B, T, N), jnp.float32),
        grid=(B,),
        in_specs=[_act_spec(T, D), _rep_spec(op["w"]), _rep_spec(op["b"])],
        out_specs=_act_spec(T, N),
        compiler_params=_cparams(),
    )(x, op["w"], op["b"])


# ------------------------------ parameter creation ------------------------------

def _dense(key, fan_in, fan_out):
    kw, kb = jax.random.split(key)
    bound = 1.0 / math.sqrt(fan_in)
    w = jax.random.uniform(kw, (fan_in, fan_out), jnp.float32, -bound, bound)
    b = jax.random.uniform(kb, (fan_out,), jnp.float32, -bound, bound)
    return w, b


def _layernorm_params(d):
    # stored as (1, D) so no per-call reshape/broadcast in the wrappers.
    return {"g": jnp.ones((1, d), jnp.float32), "b": jnp.zeros((1, d), jnp.float32)}


def _attn_params(key, d, n_heads):
    k = jax.random.split(key, 4)
    scale = 1.0 / math.sqrt(d // n_heads)
    wq, bq = _dense(k[0], d, d)
    wk, bk = _dense(k[1], d, d)
    wv, bv = _dense(k[2], d, d)
    wo, bo = _dense(k[3], d, d)
    # fused QKV weight; attention scale folded into the Q columns.
    wqkv = jnp.concatenate([wq * scale, wk, wv], axis=1)        # (D, 3D)
    bqkv = jnp.concatenate([bq * scale, bk, bv])[None, :]       # (1, 3D)
    return {"wqkv": wqkv, "bqkv": bqkv, "wo": wo, "bo": bo[None, :]}


def _ffn_params(key, d, hidden):
    k1, k2 = jax.random.split(key)
    w1, b1 = _dense(k1, d, hidden)
    w2, b2 = _dense(k2, hidden, d)
    return {"w1": w1, "b1": b1[None, :], "w2": w2, "b2": b2[None, :]}


def _sinusoidal_pos_enc(max_len, d):
    pos = jnp.arange(max_len, dtype=jnp.float32)[:, None]
    i = jnp.arange(d, dtype=jnp.float32)[None, :]
    angle = pos / jnp.power(10000.0, (2.0 * jnp.floor(i / 2.0)) / d)
    pe = jnp.where((jnp.arange(d) % 2) == 0, jnp.sin(angle), jnp.cos(angle))
    return pe.astype(jnp.float32)


def init_params(key, cfg):
    d = cfg["embed_dim"]
    hidden = 4 * d
    h = cfg["n_heads"]
    keys = jax.random.split(key, 8)

    src_emb = 0.02 * jax.random.normal(keys[0], (cfg["n_source_vocab"], d), jnp.float32)
    src_emb = src_emb.at[cfg["source_pad_idx"]].set(0.0)
    tgt_emb = 0.02 * jax.random.normal(keys[1], (cfg["n_target_vocab"], d), jnp.float32)
    tgt_emb = tgt_emb.at[cfg["target_pad_idx"]].set(0.0)

    enc_layers = []
    for lk in jax.random.split(keys[2], cfg["n_layers"]):
        ka, kf = jax.random.split(lk)
        enc_layers.append({"attn": _attn_params(ka, d, h),
                           "ln1": _layernorm_params(d),
                           "ffn": _ffn_params(kf, d, hidden),
                           "ln2": _layernorm_params(d)})

    dec_layers = []
    for lk in jax.random.split(keys[3], cfg["n_layers"]):
        ks, kc, kf = jax.random.split(lk, 3)
        dec_layers.append({"self_attn": _attn_params(ks, d, h),
                           "ln1": _layernorm_params(d),
                           "cross_attn": _attn_params(kc, d, h),
                           "ln2": _layernorm_params(d),
                           "ffn": _ffn_params(kf, d, hidden),
                           "ln3": _layernorm_params(d)})

    wout, bout = _dense(keys[4], d, cfg["ff_dim"])
    return {
        "src_emb": src_emb,
        "tgt_emb": tgt_emb,
        "pos_enc": _sinusoidal_pos_enc(cfg["max_seq_len"], d),
        "encoder": enc_layers,
        "decoder": dec_layers,
        "out": {"w": wout, "b": bout[None, :]},
    }


# --------------------------------- forward pass ---------------------------------

def transformer_forward(params, encoder_input, decoder_input, cfg):
    B, Ts = encoder_input.shape
    _, Tt = decoder_input.shape
    H = cfg["n_heads"]

    # embeddings (token gather + positional encoding) are glue; all matmul /
    # attention / LayerNorm compute lives in the fused Pallas block kernels.
    x = jnp.take(params["src_emb"], encoder_input, axis=0) + params["pos_enc"][:Ts][None]

    enc = x
    for layer in params["encoder"]:
        enc = attn_block(enc, enc, layer["attn"], layer["ln1"], H,
                         causal=False, is_self=True)
        enc = ffn_block(enc, layer["ffn"], layer["ln2"])

    y = jnp.take(params["tgt_emb"], decoder_input, axis=0) + params["pos_enc"][:Tt][None]

    dec = y
    for layer in params["decoder"]:
        dec = attn_block(dec, dec, layer["self_attn"], layer["ln1"], H,
                         causal=True, is_self=True)            # causal mask in-kernel
        dec = attn_block(dec, enc, layer["cross_attn"], layer["ln2"], H,
                         causal=False, is_self=False)
        dec = ffn_block(dec, layer["ffn"], layer["ln3"])

    # final Linear(embed_dim, ff_dim) + softmax, fused in one Pallas kernel
    return linear_softmax(dec, params["out"])


# ------------------------------------- main -------------------------------------

if __name__ == "__main__":
    cfg = dict(
        n_source_vocab=32,
        n_target_vocab=32,
        source_pad_idx=0,
        target_pad_idx=0,
        max_seq_len=16,
        embed_dim=32,
        n_heads=4,
        ff_dim=64,
        n_layers=2,
    )

    root = jax.random.PRNGKey(0)
    k_params, k_enc, k_dec = jax.random.split(root, 3)
    params = init_params(k_params, cfg)

    B, T = 2, 8
    encoder_input = jax.random.randint(k_enc, (B, T), 1, cfg["n_source_vocab"], dtype=jnp.int32)
    decoder_input = jax.random.randint(k_dec, (B, T), 1, cfg["n_target_vocab"], dtype=jnp.int32)

    out = transformer_forward(params, encoder_input, decoder_input, cfg)
    out = jax.block_until_ready(out)

    assert out.shape == (B, T, cfg["ff_dim"])
    assert bool(jnp.all(jnp.isfinite(out)))
    # rows of the softmax output must sum to ~1
    assert bool(jnp.allclose(jnp.sum(out, axis=-1), 1.0, atol=1e-4))
    print("KERNEL_OK")
</pallas_src>

<mosaic_0001>
module attributes {stable_mosaic.version = 11 : i64} {
  func.func @_attn_block_kernel(%arg0: i32, %arg1: memref<1x8x32xf32, #tpu.memory_space<vmem>>, %arg2: memref<32x96xf32, #tpu.memory_space<vmem>>, %arg3: memref<1x96xf32, #tpu.memory_space<vmem>>, %arg4: memref<32x32xf32, #tpu.memory_space<vmem>>, %arg5: memref<1x32xf32, #tpu.memory_space<vmem>>, %arg6: memref<1x32xf32, #tpu.memory_space<vmem>>, %arg7: memref<1x32xf32, #tpu.memory_space<vmem>>, %arg8: memref<1x8x32xf32, #tpu.memory_space<vmem>>) attributes {dimension_semantics = [#tpu.dimension_semantics<parallel>], iteration_bounds = array<i64: 2>, scalar_prefetch = 0 : i64, scratch_operands = 0 : i64, tpu.core_type = #tpu.core_type<tc>, window_params = [{transform_indices = @transform_0, window_bounds = array<i64: 1, 8, 32>}, {pipeline_mode = #tpu.pipeline_mode<synchronous>, transform_indices = @transform_1, window_bounds = array<i64: 32, 96>}, {pipeline_mode = #tpu.pipeline_mode<synchronous>, transform_indices = @transform_2, window_bounds = array<i64: 1, 96>}, {pipeline_mode = #tpu.pipeline_mode<synchronous>, transform_indices = @transform_3, window_bounds = array<i64: 32, 32>}, {pipeline_mode = #tpu.pipeline_mode<synchronous>, transform_indices = @transform_4, window_bounds = array<i64: 1, 32>}, {pipeline_mode = #tpu.pipeline_mode<synchronous>, transform_indices = @transform_5, window_bounds = array<i64: 1, 32>}, {pipeline_mode = #tpu.pipeline_mode<synchronous>, transform_indices = @transform_6, window_bounds = array<i64: 1, 32>}, {transform_indices = @transform_7, window_bounds = array<i64: 1, 8, 32>}]} {
    %c0 = arith.constant 0 : index
    %c0_0 = arith.constant 0 : index
    %c0_1 = arith.constant 0 : index
    %0 = vector.load %arg1[%c0, %c0_0, %c0_1] : memref<1x8x32xf32, #tpu.memory_space<vmem>>, vector<1x8x32xf32>
    %1 = vector.shape_cast %0 : vector<1x8x32xf32> to vector<8x32xf32>
    %c0_2 = arith.constant 0 : index
    %c0_3 = arith.constant 0 : index
    %2 = vector.load %arg2[%c0_2, %c0_3] : memref<32x96xf32, #tpu.memory_space<vmem>>, vector<32x96xf32>
    %3 = arith.truncf %1 : vector<8x32xf32> to vector<8x32xbf16>
    %4 = arith.truncf %2 : vector<32x96xf32> to vector<32x96xbf16>
    %cst = arith.constant dense<0.000000e+00> : vector<8x96xf32>
    %5 = tpu.matmul %3, %4, %cst {dimension_numbers = #tpu.dot_dimension_numbers<[1], [0], [0], [1], [0, 0, 1, 1], [], []>} : vector<8x32xbf16>, vector<32x96xbf16>, vector<8x96xf32> -> vector<8x96xf32>
    %c0_4 = arith.constant 0 : index
    %c0_5 = arith.constant 0 : index
    %6 = vector.load %arg3[%c0_4, %c0_5] : memref<1x96xf32, #tpu.memory_space<vmem>>, vector<1x96xf32>
    %7 = vector.broadcast %6 : vector<1x96xf32> to vector<8x96xf32>
    %8 = arith.addf %5, %7 : vector<8x96xf32>
    %9 = vector.extract_strided_slice %8 {offsets = [0, 0], sizes = [8, 32], strides = [1, 1]} : vector<8x96xf32> to vector<8x32xf32>
    %10 = vector.extract_strided_slice %8 {offsets = [0, 32], sizes = [8, 32], strides = [1, 1]} : vector<8x96xf32> to vector<8x32xf32>
    %11 = vector.extract_strided_slice %8 {offsets = [0, 64], sizes = [8, 32], strides = [1, 1]} : vector<8x96xf32> to vector<8x32xf32>
    %cst_6 = arith.constant 0.000000e+00 : f32
    %12 = vector.broadcast %cst_6 : f32 to vector<8x32xf32>
    %13 = vector.extract_strided_slice %9 {offsets = [0, 0], sizes = [8, 8], strides = [1, 1]} : vector<8x32xf32> to vector<8x8xf32>
    %14 = arith.truncf %13 : vector<8x8xf32> to vector<8x8xbf16>
    %15 = vector.extract_strided_slice %10 {offsets = [0, 0], sizes = [8, 8], strides = [1, 1]} : vector<8x32xf32> to vector<8x8xf32>
    %16 = arith.truncf %15 : vector<8x8xf32> to vector<8x8xbf16>
    %cst_7 = arith.constant dense<0.000000e+00> : vector<8x8xf32>
    %17 = tpu.matmul %14, %16, %cst_7 {dimension_numbers = #tpu.dot_dimension_numbers<[1], [1], [0], [0], [0, 0, 1, 0], [], []>} : vector<8x8xbf16>, vector<8x8xbf16>, vector<8x8xf32> -> vector<8x8xf32>
    %cst_8 = arith.constant dense<0xFF800000> : vector<8xf32>
    %18 = vector.multi_reduction <maximumf>, %17, %cst_8 [1] : vector<8x8xf32> to vector<8xf32>
    %19 = vector.shape_cast %18 : vector<8xf32> to vector<8x1xf32>
    %20 = vector.broadcast %19 : vector<8x1xf32> to vector<8x8xf32>
    %21 = arith.subf %17, %20 : vector<8x8xf32>
    %22 = math.exp %21 : vector<8x8xf32>
    %cst_9 = arith.constant dense<0.000000e+00> : vector<8xf32>
    %23 = vector.multi_reduction <add>, %22, %cst_9 [1] : vector<8x8xf32> to vector<8xf32>
    %24 = vector.shape_cast %23 : vector<8xf32> to vector<8x1xf32>
    %25 = tpu.reciprocal %24 {approx = true} : vector<8x1xf32> -> vector<8x1xf32>
    %26 = vector.broadcast %25 : vector<8x1xf32> to vector<8x8xf32>
    %27 = arith.mulf %22, %26 : vector<8x8xf32>
    %28 = vector.extract_strided_slice %11 {offsets = [0, 0], sizes = [8, 8], strides = [1, 1]} : vector<8x32xf32> to vector<8x8xf32>
    %29 = arith.truncf %27 : vector<8x8xf32> to vector<8x8xbf16>
    %30 = arith.truncf %28 : vector<8x8xf32> to vector<8x8xbf16>
    %cst_10 = arith.constant dense<0.000000e+00> : vector<8x8xf32>
    %31 = tpu.matmul %29, %30, %cst_10 {dimension_numbers = #tpu.dot_dimension_numbers<[1], [0], [0], [1], [0, 0, 1, 1], [], []>} : vector<8x8xbf16>, vector<8x8xbf16>, vector<8x8xf32> -> vector<8x8xf32>
    %c0_11 = arith.constant 0 : index
    %c0_12 = arith.constant 0 : index
    %32 = vector.load %arg4[%c0_11, %c0_12] : memref<32x32xf32, #tpu.memory_space<vmem>>, vector<8x32xf32>
    %33 = arith.truncf %31 : vector<8x8xf32> to vector<8x8xbf16>
    %34 = arith.truncf %32 : vector<8x32xf32> to vector<8x32xbf16>
    %cst_13 = arith.constant dense<0.000000e+00> : vector<8x32xf32>
    %35 = tpu.matmul %33, %34, %cst_13 {dimension_numbers = #tpu.dot_dimension_numbers<[1], [0], [0], [1], [0, 0, 1, 1], [], []>} : vector<8x8xbf16>, vector<8x32xbf16>, vector<8x32xf32> -> vector<8x32xf32>
    %36 = arith.addf %12, %35 : vector<8x32xf32>
    %37 = vector.extract_strided_slice %9 {offsets = [0, 8], sizes = [8, 8], strides = [1, 1]} : vector<8x32xf32> to vector<8x8xf32>
    %38 = arith.truncf %37 : vector<8x8xf32> to vector<8x8xbf16>
    %39 = vector.extract_strided_slice %10 {offsets = [0, 8], sizes = [8, 8], strides = [1, 1]} : vector<8x32xf32> to vector<8x8xf32>
    %40 = arith.truncf %39 : vector<8x8xf32> to vector<8x8xbf16>
    %cst_14 = arith.constant dense<0.000000e+00> : vector<8x8xf32>
    %41 = tpu.matmul %38, %40, %cst_14 {dimension_numbers = #tpu.dot_dimension_numbers<[1], [1], [0], [0], [0, 0, 1, 0], [], []>} : vector<8x8xbf16>, vector<8x8xbf16>, vector<8x8xf32> -> vector<8x8xf32>
    %cst_15 = arith.constant dense<0xFF800000> : vector<8xf32>
    %42 = vector.multi_reduction <maximumf>, %41, %cst_15 [1] : vector<8x8xf32> to vector<8xf32>
    %43 = vector.shape_cast %42 : vector<8xf32> to vector<8x1xf32>
    %44 = vector.broadcast %43 : vector<8x1xf32> to vector<8x8xf32>
    %45 = arith.subf %41, %44 : vector<8x8xf32>
    %46 = math.exp %45 : vector<8x8xf32>
    %cst_16 = arith.constant dense<0.000000e+00> : vector<8xf32>
    %47 = vector.multi_reduction <add>, %46, %cst_16 [1] : vector<8x8xf32> to vector<8xf32>
    %48 = vector.shape_cast %47 : vector<8xf32> to vector<8x1xf32>
    %49 = tpu.reciprocal %48 {approx = true} : vector<8x1xf32> -> vector<8x1xf32>
    %50 = vector.broadcast %49 : vector<8x1xf32> to vector<8x8xf32>
    %51 = arith.mulf %46, %50 : vector<8x8xf32>
    %52 = vector.extract_strided_slice %11 {offsets = [0, 8], sizes = [8, 8], strides = [1, 1]} : vector<8x32xf32> to vector<8x8xf32>
    %53 = arith.truncf %51 : vector<8x8xf32> to vector<8x8xbf16>
    %54 = arith.truncf %52 : vector<8x8xf32> to vector<8x8xbf16>
    %cst_17 = arith.constant dense<0.000000e+00> : vector<8x8xf32>
    %55 = tpu.matmul %53, %54, %cst_17 {dimension_numbers = #tpu.dot_dimension_numbers<[1], [0], [0], [1], [0, 0, 1, 1], [], []>} : vector<8x8xbf16>, vector<8x8xbf16>, vector<8x8xf32> -> vector<8x8xf32>
    %c8 = arith.constant 8 : index
    %c0_18 = arith.constant 0 : index
    %56 = vector.load %arg4[%c8, %c0_18] : memref<32x32xf32, #tpu.memory_space<vmem>>, vector<8x32xf32>
    %57 = arith.truncf %55 : vector<8x8xf32> to vector<8x8xbf16>
    %58 = arith.truncf %56 : vector<8x32xf32> to vector<8x32xbf16>
    %cst_19 = arith.constant dense<0.000000e+00> : vector<8x32xf32>
    %59 = tpu.matmul %57, %58, %cst_19 {dimension_numbers = #tpu.dot_dimension_numbers<[1], [0], [0], [1], [0, 0, 1, 1], [], []>} : vector<8x8xbf16>, vector<8x32xbf16>, vector<8x32xf32> -> vector<8x32xf32>
    %60 = arith.addf %36, %59 : vector<8x32xf32>
    %61 = vector.extract_strided_slice %9 {offsets = [0, 16], sizes = [8, 8], strides = [1, 1]} : vector<8x32xf32> to vector<8x8xf32>
    %62 = arith.truncf %61 : vector<8x8xf32> to vector<8x8xbf16>
    %63 = vector.extract_strided_slice %10 {offsets = [0, 16], sizes = [8, 8], strides = [1, 1]} : vector<8x32xf32> to vector<8x8xf32>
    %64 = arith.truncf %63 : vector<8x8xf32> to vector<8x8xbf16>
    %cst_20 = arith.constant dense<0.000000e+00> : vector<8x8xf32>
    %65 = tpu.matmul %62, %64, %cst_20 {dimension_numbers = #tpu.dot_dimension_numbers<[1], [1], [0], [0], [0, 0, 1, 0], [], []>} : vector<8x8xbf16>, vector<8x8xbf16>, vector<8x8xf32> -> vector<8x8xf32>
    %cst_21 = arith.constant dense<0xFF800000> : vector<8xf32>
    %66 = vector.multi_reduction <maximumf>, %65, %cst_21 [1] : vector<8x8xf32> to vector<8xf32>
    %67 = vector.shape_cast %66 : vector<8xf32> to vector<8x1xf32>
    %68 = vector.broadcast %67 : vector<8x1xf32> to vector<8x8xf32>
    %69 = arith.subf %65, %68 : vector<8x8xf32>
    %70 = math.exp %69 : vector<8x8xf32>
    %cst_22 = arith.constant dense<0.000000e+00> : vector<8xf32>
    %71 = vector.multi_reduction <add>, %70, %cst_22 [1] : vector<8x8xf32> to vector<8xf32>
    %72 = vector.shape_cast %71 : vector<8xf32> to vector<8x1xf32>
    %73 = tpu.reciprocal %72 {approx = true} : vector<8x1xf32> -> vector<8x1xf32>
    %74 = vector.broadcast %73 : vector<8x1xf32> to vector<8x8xf32>
    %75 = arith.mulf %70, %74 : vector<8x8xf32>
    %76 = vector.extract_strided_slice %11 {offsets = [0, 16], sizes = [8, 8], strides = [1, 1]} : vector<8x32xf32> to vector<8x8xf32>
    %77 = arith.truncf %75 : vector<8x8xf32> to vector<8x8xbf16>
    %78 = arith.truncf %76 : vector<8x8xf32> to vector<8x8xbf16>
    %cst_23 = arith.constant dense<0.000000e+00> : vector<8x8xf32>
    %79 = tpu.matmul %77, %78, %cst_23 {dimension_numbers = #tpu.dot_dimension_numbers<[1], [0], [0], [1], [0, 0, 1, 1], [], []>} : vector<8x8xbf16>, vector<8x8xbf16>, vector<8x8xf32> -> vector<8x8xf32>
    %c16 = arith.constant 16 : index
    %c0_24 = arith.constant 0 : index
    %80 = vector.load %arg4[%c16, %c0_24] : memref<32x32xf32, #tpu.memory_space<vmem>>, vector<8x32xf32>
    %81 = arith.truncf %79 : vector<8x8xf32> to vector<8x8xbf16>
    %82 = arith.truncf %80 : vector<8x32xf32> to vector<8x32xbf16>
    %cst_25 = arith.constant dense<0.000000e+00> : vector<8x32xf32>
    %83 = tpu.matmul %81, %82, %cst_25 {dimension_numbers = #tpu.dot_dimension_numbers<[1], [0], [0], [1], [0, 0, 1, 1], [], []>} : vector<8x8xbf16>, vector<8x32xbf16>, vector<8x32xf32> -> vector<8x32xf32>
    %84 = arith.addf %60, %83 : vector<8x32xf32>
    %85 = vector.extract_strided_slice %9 {offsets = [0, 24], sizes = [8, 8], strides = [1, 1]} : vector<8x32xf32> to vector<8x8xf32>
    %86 = arith.truncf %85 : vector<8x8xf32> to vector<8x8xbf16>
    %87 = vector.extract_strided_slice %10 {offsets = [0, 24], sizes = [8, 8], strides = [1, 1]} : vector<8x32xf32> to vector<8x8xf32>
    %88 = arith.truncf %87 : vector<8x8xf32> to vector<8x8xbf16>
    %cst_26 = arith.constant dense<0.000000e+00> : vector<8x8xf32>
    %89 = tpu.matmul %86, %88, %cst_26 {dimension_numbers = #tpu.dot_dimension_numbers<[1], [1], [0], [0], [0, 0, 1, 0], [], []>} : vector<8x8xbf16>, vector<8x8xbf16>, vector<8x8xf32> -> vector<8x8xf32>
    %cst_27 = arith.constant dense<0xFF800000> : vector<8xf32>
    %90 = vector.multi_reduction <maximumf>, %89, %cst_27 [1] : vector<8x8xf32> to vector<8xf32>
    %91 = vector.shape_cast %90 : vector<8xf32> to vector<8x1xf32>
    %92 = vector.broadcast %91 : vector<8x1xf32> to vector<8x8xf32>
    %93 = arith.subf %89, %92 : vector<8x8xf32>
    %94 = math.exp %93 : vector<8x8xf32>
    %cst_28 = arith.constant dense<0.000000e+00> : vector<8xf32>
    %95 = vector.multi_reduction <add>, %94, %cst_28 [1] : vector<8x8xf32> to vector<8xf32>
    %96 = vector.shape_cast %95 : vector<8xf32> to vector<8x1xf32>
    %97 = tpu.reciprocal %96 {approx = true} : vector<8x1xf32> -> vector<8x1xf32>
    %98 = vector.broadcast %97 : vector<8x1xf32> to vector<8x8xf32>
    %99 = arith.mulf %94, %98 : vector<8x8xf32>
    %100 = vector.extract_strided_slice %11 {offsets = [0, 24], sizes = [8, 8], strides = [1, 1]} : vector<8x32xf32> to vector<8x8xf32>
    %101 = arith.truncf %99 : vector<8x8xf32> to vector<8x8xbf16>
    %102 = arith.truncf %100 : vector<8x8xf32> to vector<8x8xbf16>
    %cst_29 = arith.constant dense<0.000000e+00> : vector<8x8xf32>
    %103 = tpu.matmul %101, %102, %cst_29 {dimension_numbers = #tpu.dot_dimension_numbers<[1], [0], [0], [1], [0, 0, 1, 1], [], []>} : vector<8x8xbf16>, vector<8x8xbf16>, vector<8x8xf32> -> vector<8x8xf32>
    %c24 = arith.constant 24 : index
    %c0_30 = arith.constant 0 : index
    %104 = vector.load %arg4[%c24, %c0_30] : memref<32x32xf32, #tpu.memory_space<vmem>>, vector<8x32xf32>
    %105 = arith.truncf %103 : vector<8x8xf32> to vector<8x8xbf16>
    %106 = arith.truncf %104 : vector<8x32xf32> to vector<8x32xbf16>
    %cst_31 = arith.constant dense<0.000000e+00> : vector<8x32xf32>
    %107 = tpu.matmul %105, %106, %cst_31 {dimension_numbers = #tpu.dot_dimension_numbers<[1], [0], [0], [1], [0, 0, 1, 1], [], []>} : vector<8x8xbf16>, vector<8x32xbf16>, vector<8x32xf32> -> vector<8x32xf32>
    %108 = arith.addf %84, %107 : vector<8x32xf32>
    %109 = arith.addf %1, %108 : vector<8x32xf32>
    %c0_32 = arith.constant 0 : index
    %c0_33 = arith.constant 0 : index
    %110 = vector.load %arg5[%c0_32, %c0_33] : memref<1x32xf32, #tpu.memory_space<vmem>>, vector<1x32xf32>
    %111 = vector.broadcast %110 : vector<1x32xf32> to vector<8x32xf32>
    %112 = arith.addf %109, %111 : vector<8x32xf32>
    %c0_34 = arith.constant 0 : index
    %c0_35 = arith.constant 0 : index
    %113 = vector.load %arg6[%c0_34, %c0_35] : memref<1x32xf32, #tpu.memory_space<vmem>>, vector<1x32xf32>
    %c0_36 = arith.constant 0 : index
    %c0_37 = arith.constant 0 : index
    %114 = vector.load %arg7[%c0_36, %c0_37] : memref<1x32xf32, #tpu.memory_space<vmem>>, vector<1x32xf32>
    %cst_38 = arith.constant dense<0.000000e+00> : vector<8xf32>
    %115 = vector.multi_reduction <add>, %112, %cst_38 [1] : vector<8x32xf32> to vector<8xf32>
    %116 = vector.shape_cast %115 : vector<8xf32> to vector<8x1xf32>
    %cst_39 = arith.constant 3.200000e+01 : f32
    %117 = vector.broadcast %cst_39 : f32 to vector<8x1xf32>
    %118 = arith.divf %116, %117 : vector<8x1xf32>
    %119 = vector.broadcast %118 : vector<8x1xf32> to vector<8x32xf32>
    %120 = arith.subf %112, %119 : vector<8x32xf32>
    %121 = arith.mulf %120, %120 : vector<8x32xf32>
    %cst_40 = arith.constant dense<0.000000e+00> : vector<8xf32>
    %122 = vector.multi_reduction <add>, %121, %cst_40 [1] : vector<8x32xf32> to vector<8xf32>
    %123 = vector.shape_cast %122 : vector<8xf32> to vector<8x1xf32>
    %cst_41 = arith.constant 3.200000e+01 : f32
    %124 = vector.broadcast %cst_41 : f32 to vector<8x1xf32>
    %125 = arith.divf %123, %124 : vector<8x1xf32>
    %cst_42 = arith.constant 9.99999974E-6 : f32
    %126 = vector.broadcast %cst_42 : f32 to vector<8x1xf32>
    %127 = arith.addf %125, %126 : vector<8x1xf32>
    %128 = math.rsqrt %127 : vector<8x1xf32>
    %129 = vector.broadcast %128 : vector<8x1xf32> to vector<8x32xf32>
    %130 = arith.mulf %120, %129 : vector<8x32xf32>
    %131 = vector.broadcast %113 : vector<1x32xf32> to vector<8x32xf32>
    %132 = arith.mulf %130, %131 : vector<8x32xf32>
    %133 = vector.broadcast %114 : vector<1x32xf32> to vector<8x32xf32>
    %134 = arith.addf %132, %133 : vector<8x32xf32>
    %c0_43 = arith.constant 0 : index
    %c0_44 = arith.constant 0 : index
    %c0_45 = arith.constant 0 : index
    %135 = vector.load %arg8[%c0_43, %c0_44, %c0_45] : memref<1x8x32xf32, #tpu.memory_space<vmem>>, vector<1x8x32xf32>
    %136 = vector.shape_cast %135 : vector<1x8x32xf32> to vector<8x32xf32>
    %137 = vector.shape_cast %134 : vector<8x32xf32> to vector<1x8x32xf32>
    tpu.vector_store %arg8[%c0_43, %c0_44, %c0_45], %137 {strides = array<i32>} : memref<1x8x32xf32, #tpu.memory_space<vmem>>, vector<1x8x32xf32>,
    return
  }
  func.func @transform_0(%arg0: i32) -> (i32, i32, i32) {
    %c0_i32 = arith.constant 0 : i32
    %c0_i32_0 = arith.constant 0 : i32
    %c0_i32_1 = arith.constant 0 : i32
    return %arg0, %c0_i32, %c0_i32_0 : i32, i32, i32
  }
  func.func @transform_1(%arg0: i32) -> (i32, i32) {
    %c0_i32 = arith.constant 0 : i32
    %c0_i32_0 = arith.constant 0 : i32
    %c0_i32_1 = arith.constant 0 : i32
    return %c0_i32, %c0_i32_0 : i32, i32
  }
  func.func @transform_2(%arg0: i32) -> (i32, i32) {
    %c0_i32 = arith.constant 0 : i32
    %c0_i32_0 = arith.constant 0 : i32
    %c0_i32_1 = arith.constant 0 : i32
    return %c0_i32, %c0_i32_0 : i32, i32
  }
  func.func @transform_3(%arg0: i32) -> (i32, i32) {
    %c0_i32 = arith.constant 0 : i32
    %c0_i32_0 = arith.constant 0 : i32
    %c0_i32_1 = arith.constant 0 : i32
    return %c0_i32, %c0_i32_0 : i32, i32
  }
  func.func @transform_4(%arg0: i32) -> (i32, i32) {
    %c0_i32 = arith.constant 0 : i32
    %c0_i32_0 = arith.constant 0 : i32
    %c0_i32_1 = arith.constant 0 : i32
    return %c0_i32, %c0_i32_0 : i32, i32
  }
  func.func @transform_5(%arg0: i32) -> (i32, i32) {
    %c0_i32 = arith.constant 0 : i32
    %c0_i32_0 = arith.constant 0 : i32
    %c0_i32_1 = arith.constant 0 : i32
    return %c0_i32, %c0_i32_0 : i32, i32
  }
  func.func @transform_6(%arg0: i32) -> (i32, i32) {
    %c0_i32 = arith.constant 0 : i32
    %c0_i32_0 = arith.constant 0 : i32
    %c0_i32_1 = arith.constant 0 : i32
    return %c0_i32, %c0_i32_0 : i32, i32
  }
  func.func @transform_7(%arg0: i32) -> (i32, i32, i32) {
    %c0_i32 = arith.constant 0 : i32
    %c0_i32_0 = arith.constant 0 : i32
    %c0_i32_1 = arith.constant 0 : i32
    return %arg0, %c0_i32, %c0_i32_0 : i32, i32, i32
  }
}

</mosaic_0001>

<llo_original>
// kernel: tpu_custom_call.1
$region0: #{tpu_custom_call.1}
  #allocation0 [shape = 'u32[]', space=smem, size = 0x4, offset = 0x4, fixed_abs, tag = 'smem constant byte address 0x4 - core index']
  #allocation1 [shape = 'u32[144,128]{1,0:T(1,128)}', space=vmem, size = 0x12000, scoped, tag = 'internal scratch']
  %s0 = inlined_call_operand.hbm [shape: f32[2,8,32], index: 0, kind: input, shape index: {}]
  %s1 = inlined_call_operand.hbm [shape: f32[32,96], index: 1, kind: input, shape index: {}]
  %s2 = inlined_call_operand.vmem [shape: f32[1,96], index: 2, kind: input, shape index: {}]
  %s3 = inlined_call_operand.hbm [shape: f32[32,32], index: 3, kind: input, shape index: {}]
  %s4 = inlined_call_operand.vmem [shape: f32[1,32], index: 4, kind: input, shape index: {}]
  %s5 = inlined_call_operand.vmem [shape: f32[1,32], index: 5, kind: input, shape index: {}]
  %s6 = inlined_call_operand.vmem [shape: f32[1,32], index: 6, kind: input, shape index: {}]
  %s7 = inlined_call_operand.hbm [shape: f32[2,8,32], index: 7, kind: output, shape index: {}]
  %s8 = sld [smem:[#allocation0]]
  $region73: #{tpu_custom_call.1} parent=0
    _
  %s10 = ssub.s32 1, %s8
  %s11 = scalar_select 0, %s10, %s8
  $region1: #{tpu_custom_call.1} parent=0
    #allocation2 [shape = 'u8[8192]{0}', space=vmem, size = 0x2000, scoped, tag = 'input window, operand 0']
    #allocation3 [shape = 's32[2]{0}', space=sflag, size = 0x8, scoped, tag = 'scoped memory for tpu_custom_call.1']
    #allocation4 [shape = 's32[2]{0}', space=sflag, size = 0x8, scoped, tag = 'scoped memory for tpu_custom_call.1']
    #allocation5 [shape = 'u8[16384]{0}', space=vmem, size = 0x4000, scoped, tag = 'input window, operand 1, single buffered']
    #allocation6 [shape = 's32[1]{0}', space=sflag, size = 0x4, scoped, tag = 'scoped memory for tpu_custom_call.1']
    #allocation7 [shape = 'u8[16384]{0}', space=vmem, size = 0x4000, scoped, tag = 'input window, operand 3, single buffered']
    #allocation8 [shape = 'u8[8192]{0}', space=vmem, size = 0x2000, scoped, tag = 'output window, operand 0']
    %12 = vsyncpa [#allocation3], 0
    %s13 = scalar_lea.sflag [#allocation3], 1
    %14 = vsyncpa %s13, 0
    %15 = vsyncpa [#allocation6], 0
    %16 = vsyncpa [#allocation4], 0
    %s17 = scalar_lea.sflag [#allocation4], 1
    %18 = vsyncpa %s17, 0
    loop: start=0, step=1, limit=4
    $region2: #{tpu_custom_call.1} parent=1 // loop_pre_header
      _
    $region3: #{tpu_custom_call.1} parent=1 // loop_header
      %s20 = sphi 0, %s24
      %p21 = scmp.ge.s32.totalorder %s20, 4
      %s30 = sphi 0, %s32
      %s33 = sphi 0, %s30
      %s34 = sphi 0, %s33
      %s50 = sphi 0, %s34
      %s54 = sphi 0, %s54
      %s56 = sphi 0, %s54
      %s57 = sphi 0, %s56
      %s71 = sphi 0, %s57
      %s75 = sphi 0, %s75
      %s77 = sphi 0, %s75
      %s78 = sphi 0, %s77
      %s92 = sphi 0, %s78
      %s96 = sphi 0, %s96
      %s98 = sphi 0, %s96
      %s99 = sphi 0, %s98
      %s113 = sphi 0, %s99
      %s117 = sphi 0, %s117
      %s119 = sphi 0, %s117
      %s120 = sphi 0, %s119
      %s134 = sphi 0, %s120
      %s138 = sphi 0, %s138
      %s140 = sphi 0, %s138
      %s141 = sphi 0, %s140
      %s155 = sphi 0, %s141
      %s159 = sphi 0, %s159
      %s161 = sphi 0, %s159
      %s162 = sphi 0, %s161
      %s176 = sphi 0, %s162
      %s182 = sphi 0, %s184
      %s185 = sphi 0, %s182
      %s186 = sphi 0, %s185
      %s202 = sphi 0, %s186
    $region4: #{tpu_custom_call.1} parent=1 // loop_header_branch
      %23 = sbr.rel (%p21) target = $region8
    $region5: #{tpu_custom_call.1} parent=1 // loop_body
      %s25 = ssub.s32 %s20, 1
      %s26 = ssub.s32 %s20, 2
      %s27 = sadd.s32 %s20, 1
      %s28 = ssub.s32 %s20, %s27
      %p29 = scmp.eq.s32.totalorder %s28, 0
      %s31 = sadd.s32 %s30, 1
      %s32 = scalar_select %p29, %s30, %s31
      %p35 = pneg %p29
      %p36 = scmp.eq.s32.totalorder %s20, 1
      %p37 = por %p35, %p36
      %p38 = scmp.ne.s32.totalorder %s30, %s33
      %p39 = scmp.eq.s32.totalorder %s20, 0
      %p40 = por %p38, %p39
      %p41 = scmp.ne.s32.totalorder %s30, %s33
      %p42 = scmp.eq.s32.totalorder %s25, 1
      %p43 = por %p41, %p42
      %p44 = scmp.ne.s32.totalorder %s33, %s34
      %p45 = scmp.eq.s32.totalorder %s25, 0
      %p46 = por %p44, %p45
      %p47 = scmp.ne.s32.totalorder %s33, %s34
      %p48 = scmp.eq.s32.totalorder %s26, 1
      %p49 = por %p47, %p48
      %p51 = scmp.ne.s32.totalorder %s34, %s50
      %p52 = scmp.eq.s32.totalorder %s26, 0
      %p53 = por %p51, %p52
      %s55 = sadd.s32 %s54, 1
      %p58 = scmp.eq.s32.totalorder %s20, 1
      %p59 = scmp.ne.s32.totalorder %s54, %s56
      %p60 = scmp.eq.s32.totalorder %s20, 0
      %p61 = por %p59, %p60
      %p62 = scmp.ne.s32.totalorder %s54, %s56
      %p63 = scmp.eq.s32.totalorder %s25, 1
      %p64 = por %p62, %p63
      %p65 = scmp.ne.s32.totalorder %s56, %s57
      %p66 = scmp.eq.s32.totalorder %s25, 0
      %p67 = por %p65, %p66
      %p68 = scmp.ne.s32.totalorder %s56, %s57
      %p69 = scmp.eq.s32.totalorder %s26, 1
      %p70 = por %p68, %p69
      %p72 = scmp.ne.s32.totalorder %s57, %s71
      %p73 = scmp.eq.s32.totalorder %s26, 0
      %p74 = por %p72, %p73
      %s76 = sadd.s32 %s75, 1
      %p79 = scmp.eq.s32.totalorder %s20, 1
      %p80 = scmp.ne.s32.totalorder %s75, %s77
      %p81 = scmp.eq.s32.totalorder %s20, 0
      %p82 = por %p80, %p81
      %p83 = scmp.ne.s32.totalorder %s75, %s77
      %p84 = scmp.eq.s32.totalorder %s25, 1
      %p85 = por %p83, %p84
      %p86 = scmp.ne.s32.totalorder %s77, %s78
      %p87 = scmp.eq.s32.totalorder %s25, 0
      %p88 = por %p86, %p87
      %p89 = scmp.ne.s32.totalorder %s77, %s78
      %p90 = scmp.eq.s32.totalorder %s26, 1
      %p91 = por %p89, %p90
      %p93 = scmp.ne.s32.totalorder %s78, %s92
      %p94 = scmp.eq.s32.totalorder %s26, 0
      %p95 = por %p93, %p94
      %s97 = sadd.s32 %s96, 1
      %p100 = scmp.eq.s32.totalorder %s20, 1
      %p101 = scmp.ne.s32.totalorder %s96, %s98
      %p102 = scmp.eq.s32.totalorder %s20, 0
      %p103 = por %p101, %p102
      %p104 = scmp.ne.s32.totalorder %s96, %s98
      %p105 = scmp.eq.s32.totalorder %s25, 1
      %p106 = por %p104, %p105
      %p107 = scmp.ne.s32.totalorder %s98, %s99
      %p108 = scmp.eq.s32.totalorder %s25, 0
      %p109 = por %p107, %p108
      %p110 = scmp.ne.s32.totalorder %s98, %s99
      %p111 = scmp.eq.s32.totalorder %s26, 1
      %p112 = por %p110, %p111
      %p114 = scmp.ne.s32.totalorder %s99, %s113
      %p115 = scmp.eq.s32.totalorder %s26, 0
      %p116 = por %p114, %p115
      %s118 = sadd.s32 %s117, 1
      %p121 = scmp.eq.s32.totalorder %s20, 1
      %p122 = scmp.ne.s32.totalorder %s117, %s119
      %p123 = scmp.eq.s32.totalorder %s20, 0
      %p124 = por %p122, %p123
      %p125 = scmp.ne.s32.totalorder %s117, %s119
      %p126 = scmp.eq.s32.totalorder %s25, 1
      %p127 = por %p125, %p126
      %p128 = scmp.ne.s32.totalorder %s119, %s120
      %p129 = scmp.eq.s32.totalorder %s25, 0
      %p130 = por %p128, %p129
      %p131 = scmp.ne.s32.totalorder %s119, %s120
      %p132 = scmp.eq.s32.totalorder %s26, 1
      %p133 = por %p131, %p132
      %p135 = scmp.ne.s32.totalorder %s120, %s134
      %p136 = scmp.eq.s32.totalorder %s26, 0
      %p137 = por %p135, %p136
      %s139 = sadd.s32 %s138, 1
      %p142 = scmp.eq.s32.totalorder %s20, 1
      %p143 = scmp.ne.s32.totalorder %s138, %s140
      %p144 = scmp.eq.s32.totalorder %s20, 0
      %p145 = por %p143, %p144
      %p146 = scmp.ne.s32.totalorder %s138, %s140
      %p147 = scmp.eq.s32.totalorder %s25, 1
      %p148 = por %p146, %p147
      %p149 = scmp.ne.s32.totalorder %s140, %s141
      %p150 = scmp.eq.s32.totalorder %s25, 0
      %p151 = por %p149, %p150
      %p152 = scmp.ne.s32.totalorder %s140, %s141
      %p153 = scmp.eq.s32.totalorder %s26, 1
      %p154 = por %p152, %p153
      %p156 = scmp.ne.s32.totalorder %s141, %s155
      %p157 = scmp.eq.s32.totalorder %s26, 0
      %p158 = por %p156, %p157
      %s160 = sadd.s32 %s159, 1
      %p163 = scmp.eq.s32.totalorder %s20, 1
      %p164 = scmp.ne.s32.totalorder %s159, %s161
      %p165 = scmp.eq.s32.totalorder %s20, 0
      %p166 = por %p164, %p165
      %p167 = scmp.ne.s32.totalorder %s159, %s161
      %p168 = scmp.eq.s32.totalorder %s25, 1
      %p169 = por %p167, %p168
      %p170 = scmp.ne.s32.totalorder %s161, %s162
      %p171 = scmp.eq.s32.totalorder %s25, 0
      %p172 = por %p170, %p171
      %p173 = scmp.ne.s32.totalorder %s161, %s162
      %p174 = scmp.eq.s32.totalorder %s26, 1
      %p175 = por %p173, %p174
      %p177 = scmp.ne.s32.totalorder %s162, %s176
      %p178 = scmp.eq.s32.totalorder %s26, 0
      %p179 = por %p177, %p178
      %s180 = ssub.s32 %s20, %s27
      %p181 = scmp.eq.s32.totalorder %s180, 0
      %s183 = sadd.s32 %s182, 1
      %s184 = scalar_select %p181, %s182, %s183
      %p187 = pneg %p181
      %p188 = scmp.eq.s32.totalorder %s20, 1
      %p189 = por %p187, %p188
      %p190 = scmp.ne.s32.totalorder %s182, %s185
      %p191 = scmp.eq.s32.totalorder %s20, 0
      %p192 = por %p190, %p191
      %p193 = scmp.ne.s32.totalorder %s182, %s185
      %p194 = scmp.eq.s32.totalorder %s25, 1
      %p195 = por %p193, %p194
      %p196 = scmp.ne.s32.totalorder %s185, %s186
      %p197 = scmp.eq.s32.totalorder %s25, 0
      %p198 = por %p196, %p197
      %p199 = scmp.ne.s32.totalorder %s185, %s186
      %p200 = scmp.eq.s32.totalorder %s26, 1
      %p201 = por %p199, %p200
      %p203 = scmp.ne.s32.totalorder %s186, %s202
      %p204 = scmp.eq.s32.totalorder %s26, 0
      %p205 = por %p203, %p204
      %p206 = scmp.le.s32.totalorder 1, %s20
      %p207 = scmp.lt.s32.totalorder %s20, 3
      %p208 = pnand %p206, %p207
      %p209 = pneg %p208
      // Predicated region
      $region9: #{tpu_custom_call.1} parent=5 // pred_check
        _
      $region10: #{tpu_custom_call.1} parent=5 // pred_check_branch
        %211 = sbr.rel (%p208) target = $region12
      $region11: #{tpu_custom_call.1} parent=5 // pred_region
        %s212 = ssub.s32 %s20, 1
        // Predicated region
        $region13: #{tpu_custom_call.1} parent=11 // pred_check
          %p213 = pneg %p67
        $region14: #{tpu_custom_call.1} parent=11 // pred_check_branch
          %215 = sbr.rel (%p213) target = $region16
        $region15: #{tpu_custom_call.1} parent=11 // pred_region
          %s217 = ssub.s32 512, 512
          %218 = vsyncadd [#allocation6], %s217
          %s219 = sshll.u32 [#allocation5], 4
          %s220 = int_to_ptr.vmem [resolvable:$true] %s219
          %225 = dma.hbm_to_vmem [thread:$0]  %s1, 512, %s220, [#allocation6], 128, 128, 8
        $region16: #{tpu_custom_call.1} parent=11 // pred_fallthru
          _
        // Predicated region
        $region17: #{tpu_custom_call.1} parent=11 // pred_check
          %p226 = pneg %p88
        $region18: #{tpu_custom_call.1} parent=11 // pred_check_branch
          %228 = sbr.rel (%p226) target = $region20
        $region19: #{tpu_custom_call.1} parent=11 // pred_region
          _
        $region20: #{tpu_custom_call.1} parent=11 // pred_fallthru
          _
        // Predicated region
        $region21: #{tpu_custom_call.1} parent=11 // pred_check
          %p229 = pneg %p109
        $region22: #{tpu_custom_call.1} parent=11 // pred_check_branch
          %231 = sbr.rel (%p229) target = $region24
        $region23: #{tpu_custom_call.1} parent=11 // pred_region
          %s233 = ssub.s32 512, 512
          %234 = vsyncadd [#allocation6], %s233
          %s235 = sshll.u32 [#allocation7], 4
          %s236 = int_to_ptr.vmem [resolvable:$true] %s235
          %241 = dma.hbm_to_vmem [thread:$0]  %s3, 512, %s236, [#allocation6], 128, 128, 8
        $region24: #{tpu_custom_call.1} parent=11 // pred_fallthru
          _
        // Predicated region
        $region25: #{tpu_custom_call.1} parent=11 // pred_check
          %p242 = pneg %p130
        $region26: #{tpu_custom_call.1} parent=11 // pred_check_branch
          %244 = sbr.rel (%p242) target = $region28
        $region27: #{tpu_custom_call.1} parent=11 // pred_region
          _
        $region28: #{tpu_custom_call.1} parent=11 // pred_fallthru
          _
        // Predicated region
        $region29: #{tpu_custom_call.1} parent=11 // pred_check
          %p245 = pneg %p151
        $region30: #{tpu_custom_call.1} parent=11 // pred_check_branch
          %247 = sbr.rel (%p245) target = $region32
        $region31: #{tpu_custom_call.1} parent=11 // pred_region
          _
        $region32: #{tpu_custom_call.1} parent=11 // pred_fallthru
          _
        // Predicated region
        $region33: #{tpu_custom_call.1} parent=11 // pred_check
          %p248 = pneg %p172
        $region34: #{tpu_custom_call.1} parent=11 // pred_check_branch
          %250 = sbr.rel (%p248) target = $region36
        $region35: #{tpu_custom_call.1} parent=11 // pred_region
          _
        $region36: #{tpu_custom_call.1} parent=11 // pred_fallthru
          _
      $region12: #{tpu_custom_call.1} parent=5 // pred_fallthru
        _
      %p251 = scmp.lt.s32.totalorder %s20, 2
      // Predicated region
      $region37: #{tpu_custom_call.1} parent=5 // pred_check
        %p252 = pneg %p251
      $region38: #{tpu_custom_call.1} parent=5 // pred_check_branch
        %254 = sbr.rel (%p252) target = $region40
      $region39: #{tpu_custom_call.1} parent=5 // pred_region
        // Predicated region
        $region41: #{tpu_custom_call.1} parent=39 // pred_check
          %p255 = pneg %p40
        $region42: #{tpu_custom_call.1} parent=39 // pred_check_branch
          %257 = sbr.rel (%p255) target = $region44
        $region43: #{tpu_custom_call.1} parent=39 // pred_region
          %s258 = sand.u32 %s30, 1
          %s259 = scalar_lea.sflag [#allocation3], %s258
          %s260 = sand.u32 %s30, 1
          %s261 = smul.addr %s260, 8
          %s262 = scalar_lea.vmem [#allocation2], %s261
          %s264 = ssub.s32 128, 128
          %265 = vsyncadd %s259, %s264
          %s266 = smul.addr %s20, 128
          %s267 = scalar_lea.hbm %s0, %s266
          %s269 = sshll.u32 %s262, 4
          %s270 = int_to_ptr.vmem [resolvable:$true] %s269
          %272 = dma.hbm_to_vmem [thread:$0]  %s267, 128, %s270, %s259
        $region44: #{tpu_custom_call.1} parent=39 // pred_fallthru
          _
      $region40: #{tpu_custom_call.1} parent=5 // pred_fallthru
        _
      %p273 = scmp.le.s32.totalorder 1, %s20
      %p274 = scmp.lt.s32.totalorder %s20, 3
      %p275 = pnand %p273, %p274
      %p276 = pneg %p275
      // Predicated region
      $region45: #{tpu_custom_call.1} parent=5 // pred_check
        _
      $region46: #{tpu_custom_call.1} parent=5 // pred_check_branch
        %278 = sbr.rel (%p275) target = $region48
      $region47: #{tpu_custom_call.1} parent=5 // pred_region
        %s279 = ssub.s32 %s20, 1
        %s280 = sand.u32 %s33, 1
        %s281 = scalar_lea.sflag [#allocation3], %s280
        %s282 = sand.u32 %s33, 1
        %s283 = smul.addr %s282, 8
        %s284 = scalar_lea.vmem [#allocation2], %s283
        // Predicated region
        $region49: #{tpu_custom_call.1} parent=47 // pred_check
          %p285 = pneg %p46
        $region50: #{tpu_custom_call.1} parent=47 // pred_check_branch
          %287 = sbr.rel (%p285) target = $region52
        $region51: #{tpu_custom_call.1} parent=47 // pred_region
          %288 = dma.done %s281, 128
        $region52: #{tpu_custom_call.1} parent=47 // pred_fallthru
          _
        // Predicated region
        $region53: #{tpu_custom_call.1} parent=47 // pred_check
          %p289 = pneg %p67
        $region54: #{tpu_custom_call.1} parent=47 // pred_check_branch
          %291 = sbr.rel (%p289) target = $region56
        $region55: #{tpu_custom_call.1} parent=47 // pred_region
          %292 = dma.done [#allocation6], 512
        $region56: #{tpu_custom_call.1} parent=47 // pred_fallthru
          _
        // Predicated region
        $region57: #{tpu_custom_call.1} parent=47 // pred_check
          %p293 = pneg %p109
        $region58: #{tpu_custom_call.1} parent=47 // pred_check_branch
          %295 = sbr.rel (%p293) target = $region60
        $region59: #{tpu_custom_call.1} parent=47 // pred_region
          %296 = dma.done [#allocation6], 512
        $region60: #{tpu_custom_call.1} parent=47 // pred_fallthru
          _
        %s297 = sand.u32 %s33, 1
        %s298 = scalar_lea.sflag [#allocation3], %s297
        %s299 = sand.u32 %s33, 1
        %s300 = smul.addr %s299, 8
        %s301 = scalar_lea.vmem [#allocation2], %s300
        %p302 = pneg %p46
        %p303 = pneg %p43
        %p304 = pneg %p67
        %p305 = pneg %p64
        %p306 = pneg %p88
        %p307 = pneg %p85
        %p308 = pneg %p109
        %p309 = pneg %p106
        %p310 = pneg %p130
        %p311 = pneg %p127
        %p312 = pneg %p151
        %p313 = pneg %p148
        %p314 = pneg %p172
        %p315 = pneg %p169
        %p316 = pneg %p198
        %p317 = pneg %p195
        %s318 = sand.u32 %s185, 1
        %s319 = scalar_lea.sflag [#allocation4], %s318
        %s320 = sand.u32 %s185, 1
        %s321 = smul.addr %s320, 8
        %s322 = scalar_lea.vmem [#allocation8], %s321
        %v324 = vld [vmem:[%s284] sm:$0xff]
        %v325 = vld [vmem:[#allocation5] sm:$0xff]
        %v326 = vld [vmem:[#allocation5 + $0x8] sm:$0xff]
        %v327 = vld [vmem:[#allocation5 + $0x10] sm:$0xff]
        %v328 = vld [vmem:[#allocation5 + $0x18] sm:$0xff]
        %v329 = vpack.c.bf16 %v324, %v324
        %v330 = vpack.c.bf16 %v326, %v325
        %v331 = vpack.c.bf16 %v328, %v327
        %v332 = vld [vmem:[%s2] sm:$0x1]
        %v334 = vlaneseq
        %v335 = vshrl.u32 %v334, 7
        %v336 = vsub.s32 0, %v335
        %v337 = vrot.slane %v332, %v336
        %vm339 = vcmask 261120
        %v341 = vsel %vm339, %v329, 0
        %343 = vmatprep.subr.bf16.mxu0 0
        %344 = vmatpush1.bf16.msra.mxu0 0
        %345 = vmatprep.subr.bf16.mxu0 0
        %346 = vmatpush1.bf16.msra.mxu0 0
        %347 = vmatprep.subr.bf16.mxu0 0
        %348 = vmatpush1.bf16.msra.mxu0 0
        %349 = vmatprep.subr.bf16.mxu0 0
        %350 = vmatpush1.bf16.msra.mxu0 0
        %351 = vmatprep.subr.bf16.mxu0 0
        %352 = vmatpush1.bf16.msra.mxu0 0
        %353 = vmatprep.subr.bf16.mxu0 0
        %354 = vmatpush1.bf16.msra.mxu0 0
        %355 = vmatprep.subr.bf16.mxu0 0
        %356 = vmatpush1.bf16.msra.mxu0 %v331
        %357 = vmatprep.subr.bf16.mxu0 0
        %358 = vmatpush1.bf16.msra.mxu0 %v330
        %359 = vmatprep.subr.bf16.mxu0 0
        %360 = vmatpush2.bf16.msra.mxu0 0
        %361 = vmatprep.subr.bf16.mxu0 0
        %362 = vmatpush2.bf16.msra.mxu0 0
        %363 = vmatprep.subr.bf16.mxu0 0
        %364 = vmatpush2.bf16.msra.mxu0 0
        %365 = vmatprep.subr.bf16.mxu0 0
        %366 = vmatpush2.bf16.msra.mxu0 0
        %367 = vmatprep.subr.bf16.mxu0 0
        %368 = vmatpush2.bf16.msra.mxu0 0
        %369 = vmatprep.subr.bf16.mxu0 0
        %370 = vmatpush2.bf16.msra.mxu0 0
        %371 = vmatprep.subr.bf16.mxu0 0
        %372 = vmatpush2.bf16.msra.mxu0 0
        %373 = vmatprep.subr.bf16.mxu0 0
        %374 = vmatpush2.bf16.msra.mxu0 0
        %375 = vmatprep.mubr.bf16.mxu0 0
        %376 = vmatmul.mubr.bf16.gmra.mxu0 %v341
        %v377 = vpop.f32.mrf.mxu0
        %v378 = vadd.f32 %v337, %v377
        %v379 = vpop.f32.mrf.mxu0
        %v380 = vpop.f32.mrf.mxu0
        %v381 = vpop.f32.mrf.mxu0
        %382 = vdwg.mxu0
        %v383 = vpack.c.bf16 %v378, %v378
        %385 = vrot.lane.b32.xlu0 %v383, 96
        %v386 = vpop.permute.xlu0 %385
        %vm387 = vcmask 64512
        %v389 = vsel %vm387, %v383, 0
        %v392 = vsel %vm387, %v386, 0
        %394 = vmatprep.subr.bf16.mxu0 0
        %395 = vmatpush1.bf16.xpose.msra.mxu0 0
        %396 = vmatprep.subr.bf16.mxu0 0
        %397 = vmatpush1.bf16.xpose.msra.mxu0 0
        %398 = vmatprep.subr.bf16.mxu0 0
        %399 = vmatpush1.bf16.xpose.msra.mxu0 0
        %400 = vmatprep.subr.bf16.mxu0 0
        %401 = vmatpush1.bf16.xpose.msra.mxu0 0
        %402 = vmatprep.subr.bf16.mxu0 0
        %403 = vmatpush1.bf16.xpose.msra.mxu0 0
        %404 = vmatprep.subr.bf16.mxu0 0
        %405 = vmatpush1.bf16.xpose.msra.mxu0 0
        %406 = vmatprep.subr.bf16.mxu0 0
        %407 = vmatpush1.bf16.xpose.msra.mxu0 0
        %408 = vmatprep.subr.bf16.mxu0 0
        %409 = vmatpush1.bf16.xpose.msra.mxu0 %v392
        %410 = vmatprep.subr.bf16.mxu0 0
        %411 = vmatpush2.bf16.xpose.msra.mxu0 0
        %412 = vmatprep.subr.bf16.mxu0 0
        %413 = vmatpush2.bf16.xpose.msra.mxu0 0
        %414 = vmatprep.subr.bf16.mxu0 0
        %415 = vmatpush2.bf16.xpose.msra.mxu0 0
        %416 = vmatprep.subr.bf16.mxu0 0
        %417 = vmatpush2.bf16.xpose.msra.mxu0 0
        %418 = vmatprep.subr.bf16.mxu0 0
        %419 = vmatpush2.bf16.xpose.msra.mxu0 0
        %420 = vmatprep.subr.bf16.mxu0 0
        %421 = vmatpush2.bf16.xpose.msra.mxu0 0
        %422 = vmatprep.subr.bf16.mxu0 0
        %423 = vmatpush2.bf16.xpose.msra.mxu0 0
        %424 = vmatprep.subr.bf16.mxu0 0
        %425 = vmatpush2.bf16.xpose.msra.mxu0 0
        %426 = vmatprep.mubr.bf16.mxu0 0
        %427 = vmatmul.mubr.bf16.gmra.mxu0 %v389
        %v428 = vpop.f32.mrf.mxu0
        %v429 = vadd.f32 0.0, %v428
        %v430 = vpop.f32.mrf.mxu0
        %v431 = vpop.f32.mrf.mxu0
        %v432 = vpop.f32.mrf.mxu0
        %433 = vdwg.mxu0
        %v434 = vsel %vm387, %v429, -inf
        %435 = vmax.xlane.f32.xlu0 %v434
        %v436 = vpop.xlane.xlu0 %435
        %v437 = vsub.f32 %v429, %v436
        %v438 = vmul.f32 %v437, 1.442695
        %v439 = vpow.pop %v438
        %v440 = vsel %vm387, %v439, 0.0
        %441 = vadd.xlane.f32.xlu0 %v440
        %v442 = vpop.xlane.xlu0 %441
        %v443 = vrcp.pop %v442
        %v444 = vmul.f32 %v439, %v443
        %v445 = vpack.c.bf16 %v444, %v444
        %446 = vrot.lane.b32.xlu0 %v383, 64
        %v447 = vpop.permute.xlu0 %446
        %v449 = vsel %vm387, %v445, 0
        %vm451 = vcmask 1043456
        %v453 = vsel %vm451, %v447, 0
        %455 = vmatprep.subr.bf16.mxu0 0
        %456 = vmatpush1.bf16.msra.mxu0 0
        %457 = vmatprep.subr.bf16.mxu0 0
        %458 = vmatpush1.bf16.msra.mxu0 0
        %459 = vmatprep.subr.bf16.mxu0 0
        %460 = vmatpush1.bf16.msra.mxu0 0
        %461 = vmatprep.subr.bf16.mxu0 0
        %462 = vmatpush1.bf16.msra.mxu0 0
        %463 = vmatprep.subr.bf16.mxu0 0
        %464 = vmatpush1.bf16.msra.mxu0 0
        %465 = vmatprep.subr.bf16.mxu0 0
        %466 = vmatpush1.bf16.msra.mxu0 0
        %467 = vmatprep.subr.bf16.mxu0 0
        %468 = vmatpush1.bf16.msra.mxu0 0
        %469 = vmatprep.subr.bf16.mxu0 0
        %470 = vmatpush1.bf16.msra.mxu0 %v453
        %471 = vmatprep.subr.bf16.mxu0 0
        %472 = vmatpush2.bf16.msra.mxu0 0
        %473 = vmatprep.subr.bf16.mxu0 0
        %474 = vmatpush2.bf16.msra.mxu0 0
        %475 = vmatprep.subr.bf16.mxu0 0
        %476 = vmatpush2.bf16.msra.mxu0 0
        %477 = vmatprep.subr.bf16.mxu0 0
        %478 = vmatpush2.bf16.msra.mxu0 0
        %479 = vmatprep.subr.bf16.mxu0 0
        %480 = vmatpush2.bf16.msra.mxu0 0
        %481 = vmatprep.subr.bf16.mxu0 0
        %482 = vmatpush2.bf16.msra.mxu0 0
        %483 = vmatprep.subr.bf16.mxu0 0
        %484 = vmatpush2.bf16.msra.mxu0 0
        %485 = vmatprep.subr.bf16.mxu0 0
        %486 = vmatpush2.bf16.msra.mxu0 0
        %487 = vmatprep.mubr.bf16.mxu0 0
        %488 = vmatmul.mubr.bf16.gmra.mxu0 %v449
        %v489 = vpop.f32.mrf.mxu0
        %v490 = vadd.f32 0.0, %v489
        %v491 = vpop.f32.mrf.mxu0
        %v492 = vpop.f32.mrf.mxu0
        %v493 = vpop.f32.mrf.mxu0
        %494 = vdwg.mxu0
        %v495 = vld [vmem:[#allocation7] sm:$0xff]
        %v496 = vpack.c.bf16 %v490, %v490
        %v497 = vpack.c.bf16 %v495, %v495
        %498 = vrot.lane.b32.xlu0 %v383, 120
        %v499 = vpop.permute.xlu0 %498
        %500 = vrot.lane.b32.xlu0 %v383, 88
        %v501 = vpop.permute.xlu0 %500
        %v503 = vsel %vm387, %v499, 0
        %v506 = vsel %vm387, %v501, 0
        %508 = vmatprep.subr.bf16.mxu0 0
        %509 = vmatpush1.bf16.xpose.msra.mxu0 0
        %510 = vmatprep.subr.bf16.mxu0 0
        %511 = vmatpush1.bf16.xpose.msra.mxu0 0
        %512 = vmatprep.subr.bf16.mxu0 0
        %513 = vmatpush1.bf16.xpose.msra.mxu0 0
        %514 = vmatprep.subr.bf16.mxu0 0
        %515 = vmatpush1.bf16.xpose.msra.mxu0 0
        %516 = vmatprep.subr.bf16.mxu0 0
        %517 = vmatpush1.bf16.xpose.msra.mxu0 0
        %518 = vmatprep.subr.bf16.mxu0 0
        %519 = vmatpush1.bf16.xpose.msra.mxu0 0
        %520 = vmatprep.subr.bf16.mxu0 0
        %521 = vmatpush1.bf16.xpose.msra.mxu0 0
        %522 = vmatprep.subr.bf16.mxu0 0
        %523 = vmatpush1.bf16.xpose.msra.mxu0 %v506
        %524 = vmatprep.subr.bf16.mxu0 0
        %525 = vmatpush2.bf16.xpose.msra.mxu0 0
        %526 = vmatprep.subr.bf16.mxu0 0
        %527 = vmatpush2.bf16.xpose.msra.mxu0 0
        %528 = vmatprep.subr.bf16.mxu0 0
        %529 = vmatpush2.bf16.xpose.msra.mxu0 0
        %530 = vmatprep.subr.bf16.mxu0 0
        %531 = vmatpush2.bf16.xpose.msra.mxu0 0
        %532 = vmatprep.subr.bf16.mxu0 0
        %533 = vmatpush2.bf16.xpose.msra.mxu0 0
        %534 = vmatprep.subr.bf16.mxu0 0
        %535 = vmatpush2.bf16.xpose.msra.mxu0 0
        %536 = vmatprep.subr.bf16.mxu0 0
        %537 = vmatpush2.bf16.xpose.msra.mxu0 0
        %538 = vmatprep.subr.bf16.mxu0 0
        %539 = vmatpush2.bf16.xpose.msra.mxu0 0
        %540 = vmatprep.mubr.bf16.mxu0 0
        %541 = vmatmul.mubr.bf16.gmra.mxu0 %v503
        %v542 = vpop.f32.mrf.mxu0
        %v543 = vadd.f32 0.0, %v542
        %v544 = vpop.f32.mrf.mxu0
        %v545 = vpop.f32.mrf.mxu0
        %v546 = vpop.f32.mrf.mxu0
        %547 = vdwg.mxu0
        %v548 = vsel %vm387, %v543, -inf
        %549 = vmax.xlane.f32.xlu0 %v548
        %v550 = vpop.xlane.xlu0 %549
        %v551 = vsub.f32 %v543, %v550
        %v552 = vmul.f32 %v551, 1.442695
        %v553 = vpow.pop %v552
        %v554 = vsel %vm387, %v553, 0.0
        %555 = vadd.xlane.f32.xlu0 %v554
        %v556 = vpop.xlane.xlu0 %555
        %v557 = vrcp.pop %v556
        %v558 = vmul.f32 %v553, %v557
        %v559 = vpack.c.bf16 %v558, %v558
        %560 = vrot.lane.b32.xlu0 %v383, 56
        %v561 = vpop.permute.xlu0 %560
        %v563 = vsel %vm387, %v559, 0
        %v566 = vsel %vm451, %v561, 0
        %568 = vmatprep.subr.bf16.mxu0 0
        %569 = vmatpush1.bf16.msra.mxu0 0
        %570 = vmatprep.subr.bf16.mxu0 0
        %571 = vmatpush1.bf16.msra.mxu0 0
        %572 = vmatprep.subr.bf16.mxu0 0
        %573 = vmatpush1.bf16.msra.mxu0 0
        %574 = vmatprep.subr.bf16.mxu0 0
        %575 = vmatpush1.bf16.msra.mxu0 0
        %576 = vmatprep.subr.bf16.mxu0 0
        %577 = vmatpush1.bf16.msra.mxu0 0
        %578 = vmatprep.subr.bf16.mxu0 0
        %579 = vmatpush1.bf16.msra.mxu0 0
        %580 = vmatprep.subr.bf16.mxu0 0
        %581 = vmatpush1.bf16.msra.mxu0 0
        %582 = vmatprep.subr.bf16.mxu0 0
        %583 = vmatpush1.bf16.msra.mxu0 %v566
        %584 = vmatprep.subr.bf16.mxu0 0
        %585 = vmatpush2.bf16.msra.mxu0 0
        %586 = vmatprep.subr.bf16.mxu0 0
        %587 = vmatpush2.bf16.msra.mxu0 0
        %588 = vmatprep.subr.bf16.mxu0 0
        %589 = vmatpush2.bf16.msra.mxu0 0
        %590 = vmatprep.subr.bf16.mxu0 0
        %591 = vmatpush2.bf16.msra.mxu0 0
        %592 = vmatprep.subr.bf16.mxu0 0
        %593 = vmatpush2.bf16.msra.mxu0 0
        %594 = vmatprep.subr.bf16.mxu0 0
        %595 = vmatpush2.bf16.msra.mxu0 0
        %596 = vmatprep.subr.bf16.mxu0 0
        %597 = vmatpush2.bf16.msra.mxu0 0
        %598 = vmatprep.subr.bf16.mxu0 0
        %599 = vmatpush2.bf16.msra.mxu0 0
        %600 = vmatprep.mubr.bf16.mxu0 0
        %601 = vmatmul.mubr.bf16.gmra.mxu0 %v563
        %v602 = vpop.f32.mrf.mxu0
        %v603 = vadd.f32 0.0, %v602
        %v604 = vpop.f32.mrf.mxu0
        %v605 = vpop.f32.mrf.mxu0
        %v606 = vpop.f32.mrf.mxu0
        %607 = vdwg.mxu0
        %v608 = vld [vmem:[#allocation7 + $0x8] sm:$0xff]
        %v609 = vpack.c.bf16 %v603, %v603
        %v610 = vpack.c.bf16 %v608, %v608
        %v612 = vsel %vm387, %v609, 0
        %v615 = vsel %vm451, %v610, 0
        %617 = vmatprep.subr.bf16.mxu0 0
        %618 = vmatpush1.bf16.msra.mxu0 0
        %619 = vmatprep.subr.bf16.mxu0 0
        %620 = vmatpush1.bf16.msra.mxu0 0
        %621 = vmatprep.subr.bf16.mxu0 0
        %622 = vmatpush1.bf16.msra.mxu0 0
        %623 = vmatprep.subr.bf16.mxu0 0
        %624 = vmatpush1.bf16.msra.mxu0 0
        %625 = vmatprep.subr.bf16.mxu0 0
        %626 = vmatpush1.bf16.msra.mxu0 0
        %627 = vmatprep.subr.bf16.mxu0 0
        %628 = vmatpush1.bf16.msra.mxu0 0
        %629 = vmatprep.subr.bf16.mxu0 0
        %630 = vmatpush1.bf16.msra.mxu0 0
        %631 = vmatprep.subr.bf16.mxu0 0
        %632 = vmatpush1.bf16.msra.mxu0 %v615
        %633 = vmatprep.subr.bf16.mxu0 0
        %634 = vmatpush2.bf16.msra.mxu0 0
        %635 = vmatprep.subr.bf16.mxu0 0
        %636 = vmatpush2.bf16.msra.mxu0 0
        %637 = vmatprep.subr.bf16.mxu0 0
        %638 = vmatpush2.bf16.msra.mxu0 0
        %639 = vmatprep.subr.bf16.mxu0 0
        %640 = vmatpush2.bf16.msra.mxu0 0
        %641 = vmatprep.subr.bf16.mxu0 0
        %642 = vmatpush2.bf16.msra.mxu0 0
        %643 = vmatprep.subr.bf16.mxu0 0
        %644 = vmatpush2.bf16.msra.mxu0 0
        %645 = vmatprep.subr.bf16.mxu0 0
        %646 = vmatpush2.bf16.msra.mxu0 0
        %647 = vmatprep.subr.bf16.mxu0 0
        %648 = vmatpush2.bf16.msra.mxu0 0
        %649 = vmatprep.mubr.bf16.mxu0 0
        %650 = vmatmul.mubr.bf16.gmra.mxu0 %v612
        %v651 = vpop.f32.mrf.mxu0
        %v652 = vadd.f32 0.0, %v651
        %v653 = vpop.f32.mrf.mxu0
        %v654 = vpop.f32.mrf.mxu0
        %v655 = vpop.f32.mrf.mxu0
        %656 = vdwg.mxu0
        %v658 = vsel %vm387, %v496, 0
        %v661 = vsel %vm451, %v497, 0
        %663 = vmatprep.subr.bf16.mxu0 0
        %664 = vmatpush1.bf16.msra.mxu0 0
        %665 = vmatprep.subr.bf16.mxu0 0
        %666 = vmatpush1.bf16.msra.mxu0 0
        %667 = vmatprep.subr.bf16.mxu0 0
        %668 = vmatpush1.bf16.msra.mxu0 0
        %669 = vmatprep.subr.bf16.mxu0 0
        %670 = vmatpush1.bf16.msra.mxu0 0
        %671 = vmatprep.subr.bf16.mxu0 0
        %672 = vmatpush1.bf16.msra.mxu0 0
        %673 = vmatprep.subr.bf16.mxu0 0
        %674 = vmatpush1.bf16.msra.mxu0 0
        %675 = vmatprep.subr.bf16.mxu0 0
        %676 = vmatpush1.bf16.msra.mxu0 0
        %677 = vmatprep.subr.bf16.mxu0 0
        %678 = vmatpush1.bf16.msra.mxu0 %v661
        %679 = vmatprep.subr.bf16.mxu0 0
        %680 = vmatpush2.bf16.msra.mxu0 0
        %681 = vmatprep.subr.bf16.mxu0 0
        %682 = vmatpush2.bf16.msra.mxu0 0
        %683 = vmatprep.subr.bf16.mxu0 0
        %684 = vmatpush2.bf16.msra.mxu0 0
        %685 = vmatprep.subr.bf16.mxu0 0
        %686 = vmatpush2.bf16.msra.mxu0 0
        %687 = vmatprep.subr.bf16.mxu0 0
        %688 = vmatpush2.bf16.msra.mxu0 0
        %689 = vmatprep.subr.bf16.mxu0 0
        %690 = vmatpush2.bf16.msra.mxu0 0
        %691 = vmatprep.subr.bf16.mxu0 0
        %692 = vmatpush2.bf16.msra.mxu0 0
        %693 = vmatprep.subr.bf16.mxu0 0
        %694 = vmatpush2.bf16.msra.mxu0 0
        %695 = vmatprep.mubr.bf16.mxu0 0
        %696 = vmatmul.mubr.bf16.gmra.mxu0 %v658
        %v697 = vpop.f32.mrf.mxu0
        %v698 = vadd.f32 %v652, %v697
        %v699 = vpop.f32.mrf.mxu0
        %v700 = vpop.f32.mrf.mxu0
        %v701 = vpop.f32.mrf.mxu0
        %702 = vdwg.mxu0
        %703 = vrot.lane.b32.xlu0 %v383, 112
        %v704 = vpop.permute.xlu0 %703
        %705 = vrot.lane.b32.xlu0 %v383, 80
        %v706 = vpop.permute.xlu0 %705
        %v708 = vsel %vm387, %v704, 0
        %v711 = vsel %vm387, %v706, 0
        %713 = vmatprep.subr.bf16.mxu0 0
        %714 = vmatpush1.bf16.xpose.msra.mxu0 0
        %715 = vmatprep.subr.bf16.mxu0 0
        %716 = vmatpush1.bf16.xpose.msra.mxu0 0
        %717 = vmatprep.subr.bf16.mxu0 0
        %718 = vmatpush1.bf16.xpose.msra.mxu0 0
        %719 = vmatprep.subr.bf16.mxu0 0
        %720 = vmatpush1.bf16.xpose.msra.mxu0 0
        %721 = vmatprep.subr.bf16.mxu0 0
        %722 = vmatpush1.bf16.xpose.msra.mxu0 0
        %723 = vmatprep.subr.bf16.mxu0 0
        %724 = vmatpush1.bf16.xpose.msra.mxu0 0
        %725 = vmatprep.subr.bf16.mxu0 0
        %726 = vmatpush1.bf16.xpose.msra.mxu0 0
        %727 = vmatprep.subr.bf16.mxu0 0
        %728 = vmatpush1.bf16.xpose.msra.mxu0 %v711
        %729 = vmatprep.subr.bf16.mxu0 0
        %730 = vmatpush2.bf16.xpose.msra.mxu0 0
        %731 = vmatprep.subr.bf16.mxu0 0
        %732 = vmatpush2.bf16.xpose.msra.mxu0 0
        %733 = vmatprep.subr.bf16.mxu0 0
        %734 = vmatpush2.bf16.xpose.msra.mxu0 0
        %735 = vmatprep.subr.bf16.mxu0 0
        %736 = vmatpush2.bf16.xpose.msra.mxu0 0
        %737 = vmatprep.subr.bf16.mxu0 0
        %738 = vmatpush2.bf16.xpose.msra.mxu0 0
        %739 = vmatprep.subr.bf16.mxu0 0
        %740 = vmatpush2.bf16.xpose.msra.mxu0 0
        %741 = vmatprep.subr.bf16.mxu0 0
        %742 = vmatpush2.bf16.xpose.msra.mxu0 0
        %743 = vmatprep.subr.bf16.mxu0 0
        %744 = vmatpush2.bf16.xpose.msra.mxu0 0
        %745 = vmatprep.mubr.bf16.mxu0 0
        %746 = vmatmul.mubr.bf16.gmra.mxu0 %v708
        %v747 = vpop.f32.mrf.mxu0
        %v748 = vadd.f32 0.0, %v747
        %v749 = vpop.f32.mrf.mxu0
        %v750 = vpop.f32.mrf.mxu0
        %v751 = vpop.f32.mrf.mxu0
        %752 = vdwg.mxu0
        %v753 = vsel %vm387, %v748, -inf
        %754 = vmax.xlane.f32.xlu0 %v753
        %v755 = vpop.xlane.xlu0 %754
        %v756 = vsub.f32 %v748, %v755
        %v757 = vmul.f32 %v756, 1.442695
        %v758 = vpow.pop %v757
        %v759 = vsel %vm387, %v758, 0.0
        %760 = vadd.xlane.f32.xlu0 %v759
        %v761 = vpop.xlane.xlu0 %760
        %v762 = vrcp.pop %v761
        %v763 = vmul.f32 %v758, %v762
        %v764 = vpack.c.bf16 %v763, %v763
        %765 = vrot.lane.b32.xlu0 %v383, 48
        %v766 = vpop.permute.xlu0 %765
        %v768 = vsel %vm387, %v764, 0
        %v771 = vsel %vm451, %v766, 0
        %773 = vmatprep.subr.bf16.mxu0 0
        %774 = vmatpush1.bf16.msra.mxu0 0
        %775 = vmatprep.subr.bf16.mxu0 0
        %776 = vmatpush1.bf16.msra.mxu0 0
        %777 = vmatprep.subr.bf16.mxu0 0
        %778 = vmatpush1.bf16.msra.mxu0 0
        %779 = vmatprep.subr.bf16.mxu0 0
        %780 = vmatpush1.bf16.msra.mxu0 0
        %781 = vmatprep.subr.bf16.mxu0 0
        %782 = vmatpush1.bf16.msra.mxu0 0
        %783 = vmatprep.subr.bf16.mxu0 0
        %784 = vmatpush1.bf16.msra.mxu0 0
        %785 = vmatprep.subr.bf16.mxu0 0
        %786 = vmatpush1.bf16.msra.mxu0 0
        %787 = vmatprep.subr.bf16.mxu0 0
        %788 = vmatpush1.bf16.msra.mxu0 %v771
        %789 = vmatprep.subr.bf16.mxu0 0
        %790 = vmatpush2.bf16.msra.mxu0 0
        %791 = vmatprep.subr.bf16.mxu0 0
        %792 = vmatpush2.bf16.msra.mxu0 0
        %793 = vmatprep.subr.bf16.mxu0 0
        %794 = vmatpush2.bf16.msra.mxu0 0
        %795 = vmatprep.subr.bf16.mxu0 0
        %796 = vmatpush2.bf16.msra.mxu0 0
        %797 = vmatprep.subr.bf16.mxu0 0
        %798 = vmatpush2.bf16.msra.mxu0 0
        %799 = vmatprep.subr.bf16.mxu0 0
        %800 = vmatpush2.bf16.msra.mxu0 0
        %801 = vmatprep.subr.bf16.mxu0 0
        %802 = vmatpush2.bf16.msra.mxu0 0
        %803 = vmatprep.subr.bf16.mxu0 0
        %804 = vmatpush2.bf16.msra.mxu0 0
        %805 = vmatprep.mubr.bf16.mxu0 0
        %806 = vmatmul.mubr.bf16.gmra.mxu0 %v768
        %v807 = vpop.f32.mrf.mxu0
        %v808 = vadd.f32 0.0, %v807
        %v809 = vpop.f32.mrf.mxu0
        %v810 = vpop.f32.mrf.mxu0
        %v811 = vpop.f32.mrf.mxu0
        %812 = vdwg.mxu0
        %v813 = vld [vmem:[#allocation7 + $0x10] sm:$0xff]
        %v814 = vpack.c.bf16 %v808, %v808
        %v815 = vpack.c.bf16 %v813, %v813
        %v817 = vsel %vm387, %v814, 0
        %v820 = vsel %vm451, %v815, 0
        %822 = vmatprep.subr.bf16.mxu0 0
        %823 = vmatpush1.bf16.msra.mxu0 0
        %824 = vmatprep.subr.bf16.mxu0 0
        %825 = vmatpush1.bf16.msra.mxu0 0
        %826 = vmatprep.subr.bf16.mxu0 0
        %827 = vmatpush1.bf16.msra.mxu0 0
        %828 = vmatprep.subr.bf16.mxu0 0
        %829 = vmatpush1.bf16.msra.mxu0 0
        %830 = vmatprep.subr.bf16.mxu0 0
        %831 = vmatpush1.bf16.msra.mxu0 0
        %832 = vmatprep.subr.bf16.mxu0 0
        %833 = vmatpush1.bf16.msra.mxu0 0
        %834 = vmatprep.subr.bf16.mxu0 0
        %835 = vmatpush1.bf16.msra.mxu0 0
        %836 = vmatprep.subr.bf16.mxu0 0
        %837 = vmatpush1.bf16.msra.mxu0 %v820
        %838 = vmatprep.subr.bf16.mxu0 0
        %839 = vmatpush2.bf16.msra.mxu0 0
        %840 = vmatprep.subr.bf16.mxu0 0
        %841 = vmatpush2.bf16.msra.mxu0 0
        %842 = vmatprep.subr.bf16.mxu0 0
        %843 = vmatpush2.bf16.msra.mxu0 0
        %844 = vmatprep.subr.bf16.mxu0 0
        %845 = vmatpush2.bf16.msra.mxu0 0
        %846 = vmatprep.subr.bf16.mxu0 0
        %847 = vmatpush2.bf16.msra.mxu0 0
        %848 = vmatprep.subr.bf16.mxu0 0
        %849 = vmatpush2.bf16.msra.mxu0 0
        %850 = vmatprep.subr.bf16.mxu0 0
        %851 = vmatpush2.bf16.msra.mxu0 0
        %852 = vmatprep.subr.bf16.mxu0 0
        %853 = vmatpush2.bf16.msra.mxu0 0
        %854 = vmatprep.mubr.bf16.mxu0 0
        %855 = vmatmul.mubr.bf16.gmra.mxu0 %v817
        %v856 = vpop.f32.mrf.mxu0
        %v857 = vadd.f32 0.0, %v856
        %v858 = vpop.f32.mrf.mxu0
        %v859 = vpop.f32.mrf.mxu0
        %v860 = vpop.f32.mrf.mxu0
        %861 = vdwg.mxu0
        %v862 = vadd.f32 %v698, %v857
        %863 = vrot.lane.b32.xlu0 %v383, 104
        %v864 = vpop.permute.xlu0 %863
        %865 = vrot.lane.b32.xlu0 %v383, 72
        %v866 = vpop.permute.xlu0 %865
        %v868 = vsel %vm387, %v864, 0
        %v871 = vsel %vm387, %v866, 0
        %873 = vmatprep.subr.bf16.mxu0 0
        %874 = vmatpush1.bf16.xpose.msra.mxu0 0
        %875 = vmatprep.subr.bf16.mxu0 0
        %876 = vmatpush1.bf16.xpose.msra.mxu0 0
        %877 = vmatprep.subr.bf16.mxu0 0
        %878 = vmatpush1.bf16.xpose.msra.mxu0 0
        %879 = vmatprep.subr.bf16.mxu0 0
        %880 = vmatpush1.bf16.xpose.msra.mxu0 0
        %881 = vmatprep.subr.bf16.mxu0 0
        %882 = vmatpush1.bf16.xpose.msra.mxu0 0
        %883 = vmatprep.subr.bf16.mxu0 0
        %884 = vmatpush1.bf16.xpose.msra.mxu0 0
        %885 = vmatprep.subr.bf16.mxu0 0
        %886 = vmatpush1.bf16.xpose.msra.mxu0 0
        %887 = vmatprep.subr.bf16.mxu0 0
        %888 = vmatpush1.bf16.xpose.msra.mxu0 %v871
        %889 = vmatprep.subr.bf16.mxu0 0
        %890 = vmatpush2.bf16.xpose.msra.mxu0 0
        %891 = vmatprep.subr.bf16.mxu0 0
        %892 = vmatpush2.bf16.xpose.msra.mxu0 0
        %893 = vmatprep.subr.bf16.mxu0 0
        %894 = vmatpush2.bf16.xpose.msra.mxu0 0
        %895 = vmatprep.subr.bf16.mxu0 0
        %896 = vmatpush2.bf16.xpose.msra.mxu0 0
        %897 = vmatprep.subr.bf16.mxu0 0
        %898 = vmatpush2.bf16.xpose.msra.mxu0 0
        %899 = vmatprep.subr.bf16.mxu0 0
        %900 = vmatpush2.bf16.xpose.msra.mxu0 0
        %901 = vmatprep.subr.bf16.mxu0 0
        %902 = vmatpush2.bf16.xpose.msra.mxu0 0
        %903 = vmatprep.subr.bf16.mxu0 0
        %904 = vmatpush2.bf16.xpose.msra.mxu0 0
        %905 = vmatprep.mubr.bf16.mxu0 0
        %906 = vmatmul.mubr.bf16.gmra.mxu0 %v868
        %v907 = vpop.f32.mrf.mxu0
        %v908 = vadd.f32 0.0, %v907
        %v909 = vpop.f32.mrf.mxu0
        %v910 = vpop.f32.mrf.mxu0
        %v911 = vpop.f32.mrf.mxu0
        %912 = vdwg.mxu0
        %v913 = vsel %vm387, %v908, -inf
        %914 = vmax.xlane.f32.xlu0 %v913
        %v915 = vpop.xlane.xlu0 %914
        %v916 = vsub.f32 %v908, %v915
        %v917 = vmul.f32 %v916, 1.442695
        %v918 = vpow.pop %v917
        %v919 = vsel %vm387, %v918, 0.0
        %920 = vadd.xlane.f32.xlu0 %v919
        %v921 = vpop.xlane.xlu0 %920
        %v922 = vrcp.pop %v921
        %v923 = vmul.f32 %v918, %v922
        %v924 = vpack.c.bf16 %v923, %v923
        %925 = vrot.lane.b32.xlu0 %v383, 40
        %v926 = vpop.permute.xlu0 %925
        %v928 = vsel %vm387, %v924, 0
        %v931 = vsel %vm451, %v926, 0
        %933 = vmatprep.subr.bf16.mxu0 0
        %934 = vmatpush1.bf16.msra.mxu0 0
        %935 = vmatprep.subr.bf16.mxu0 0
        %936 = vmatpush1.bf16.msra.mxu0 0
        %937 = vmatprep.subr.bf16.mxu0 0
        %938 = vmatpush1.bf16.msra.mxu0 0
        %939 = vmatprep.subr.bf16.mxu0 0
        %940 = vmatpush1.bf16.msra.mxu0 0
        %941 = vmatprep.subr.bf16.mxu0 0
        %942 = vmatpush1.bf16.msra.mxu0 0
        %943 = vmatprep.subr.bf16.mxu0 0
        %944 = vmatpush1.bf16.msra.mxu0 0
        %945 = vmatprep.subr.bf16.mxu0 0
        %946 = vmatpush1.bf16.msra.mxu0 0
        %947 = vmatprep.subr.bf16.mxu0 0
        %948 = vmatpush1.bf16.msra.mxu0 %v931
        %949 = vmatprep.subr.bf16.mxu0 0
        %950 = vmatpush2.bf16.msra.mxu0 0
        %951 = vmatprep.subr.bf16.mxu0 0
        %952 = vmatpush2.bf16.msra.mxu0 0
        %953 = vmatprep.subr.bf16.mxu0 0
        %954 = vmatpush2.bf16.msra.mxu0 0
        %955 = vmatprep.subr.bf16.mxu0 0
        %956 = vmatpush2.bf16.msra.mxu0 0
        %957 = vmatprep.subr.bf16.mxu0 0
        %958 = vmatpush2.bf16.msra.mxu0 0
        %959 = vmatprep.subr.bf16.mxu0 0
        %960 = vmatpush2.bf16.msra.mxu0 0
        %961 = vmatprep.subr.bf16.mxu0 0
        %962 = vmatpush2.bf16.msra.mxu0 0
        %963 = vmatprep.subr.bf16.mxu0 0
        %964 = vmatpush2.bf16.msra.mxu0 0
        %965 = vmatprep.mubr.bf16.mxu0 0
        %966 = vmatmul.mubr.bf16.gmra.mxu0 %v928
        %v967 = vpop.f32.mrf.mxu0
        %v968 = vadd.f32 0.0, %v967
        %v969 = vpop.f32.mrf.mxu0
        %v970 = vpop.f32.mrf.mxu0
        %v971 = vpop.f32.mrf.mxu0
        %972 = vdwg.mxu0
        %v973 = vld [vmem:[#allocation7 + $0x18] sm:$0xff]
        %v974 = vpack.c.bf16 %v968, %v968
        %v975 = vpack.c.bf16 %v973, %v973
        %v977 = vsel %vm387, %v974, 0
        %v980 = vsel %vm451, %v975, 0
        %982 = vmatprep.subr.bf16.mxu0 0
        %983 = vmatpush1.bf16.msra.mxu0 0
        %984 = vmatprep.subr.bf16.mxu0 0
        %985 = vmatpush1.bf16.msra.mxu0 0
        %986 = vmatprep.subr.bf16.mxu0 0
        %987 = vmatpush1.bf16.msra.mxu0 0
        %988 = vmatprep.subr.bf16.mxu0 0
        %989 = vmatpush1.bf16.msra.mxu0 0
        %990 = vmatprep.subr.bf16.mxu0 0
        %991 = vmatpush1.bf16.msra.mxu0 0
        %992 = vmatprep.subr.bf16.mxu0 0
        %993 = vmatpush1.bf16.msra.mxu0 0
        %994 = vmatprep.subr.bf16.mxu0 0
        %995 = vmatpush1.bf16.msra.mxu0 0
        %996 = vmatprep.subr.bf16.mxu0 0
        %997 = vmatpush1.bf16.msra.mxu0 %v980
        %998 = vmatprep.subr.bf16.mxu0 0
        %999 = vmatpush2.bf16.msra.mxu0 0
        %1000 = vmatprep.subr.bf16.mxu0 0
        %1001 = vmatpush2.bf16.msra.mxu0 0
        %1002 = vmatprep.subr.bf16.mxu0 0
        %1003 = vmatpush2.bf16.msra.mxu0 0
        %1004 = vmatprep.subr.bf16.mxu0 0
        %1005 = vmatpush2.bf16.msra.mxu0 0
        %1006 = vmatprep.subr.bf16.mxu0 0
        %1007 = vmatpush2.bf16.msra.mxu0 0
        %1008 = vmatprep.subr.bf16.mxu0 0
        %1009 = vmatpush2.bf16.msra.mxu0 0
        %1010 = vmatprep.subr.bf16.mxu0 0
        %1011 = vmatpush2.bf16.msra.mxu0 0
        %1012 = vmatprep.subr.bf16.mxu0 0
        %1013 = vmatpush2.bf16.msra.mxu0 0
        %1014 = vmatprep.mubr.bf16.mxu0 0
        %1015 = vmatmul.mubr.bf16.gmra.mxu0 %v977
        %v1016 = vpop.f32.mrf.mxu0
        %v1017 = vadd.f32 0.0, %v1016
        %v1018 = vpop.f32.mrf.mxu0
        %v1019 = vpop.f32.mrf.mxu0
        %v1020 = vpop.f32.mrf.mxu0
        %1021 = vdwg.mxu0
        %v1022 = vadd.f32 %v862, %v1017
        %v1023 = vadd.f32 %v324, %v1022
        %v1024 = vld [vmem:[%s4] sm:$0x1]
        %v1026 = vlaneseq
        %v1027 = vshrl.u32 %v1026, 7
        %v1028 = vsub.s32 0, %v1027
        %v1029 = vrot.slane %v1024, %v1028
        %v1031 = vadd.f32 %v1023, %v1029
        %v1032 = vld [vmem:[%s5] sm:$0x1]
        %v1033 = vld [vmem:[%s6] sm:$0x1]
        %v1034 = vsel %vm339, %v1031, 0.0
        %1035 = vadd.xlane.f32.xlu0 %v1034
        %v1036 = vpop.xlane.xlu0 %1035
        %v1037 = vrcp.pop 32.0
        %v1038 = vmul.f32 %v1036, %v1037
        %v1039 = vsub.f32 %v1031, %v1038
        %v1040 = vmul.f32 %v1039, %v1039
        %v1041 = vsel %vm339, %v1040, 0.0
        %1042 = vadd.xlane.f32.xlu0 %v1041
        %v1043 = vpop.xlane.xlu0 %1042
        %v1044 = vmul.f32 %v1043, %v1037
        %v1045 = vadd.f32 %v1044, 1e-05
        %v1046 = vrsqrt.pop %v1045
        %v1047 = vmul.f32 %v1039, %v1046
        %v1049 = vlaneseq
        %v1050 = vshrl.u32 %v1049, 7
        %v1051 = vsub.s32 0, %v1050
        %v1052 = vrot.slane %v1032, %v1051
        %v1054 = vmul.f32 %v1047, %v1052
        %v1056 = vlaneseq
        %v1057 = vshrl.u32 %v1056, 7
        %v1058 = vsub.s32 0, %v1057
        %v1059 = vrot.slane %v1033, %v1058
        %v1061 = vadd.f32 %v1054, %v1059
        %1062 = vst.msk [vmem:[%s322] sm:$0xff] %vm339, %v1061
        %s1063 = sand.u32 %s185, 1
        %s1064 = scalar_lea.sflag [#allocation4], %s1063
        %s1065 = sand.u32 %s185, 1
        %s1066 = smul.addr %s1065, 8
        %s1067 = scalar_lea.vmem [#allocation8], %s1066
        // Predicated region
        $region61: #{tpu_custom_call.1} parent=47 // pred_check
          %p1068 = pneg %p195
        $region62: #{tpu_custom_call.1} parent=47 // pred_check_branch
          %1070 = sbr.rel (%p1068) target = $region64
        $region63: #{tpu_custom_call.1} parent=47 // pred_region
          %s1072 = ssub.s32 128, 128
          %1073 = vsyncadd %s1064, %s1072
          %s1074 = smul.addr %s25, 128
          %s1075 = scalar_lea.hbm %s7, %s1074
          %s1077 = sshll.u32 %s1067, 4
          %s1078 = int_to_ptr.vmem [resolvable:$true] %s1077
          %1080 = dma.vmem_to_hbm [thread:$0]  %s1078, 128, %s1075, %s1064
        $region64: #{tpu_custom_call.1} parent=47 // pred_fallthru
          _
      $region48: #{tpu_custom_call.1} parent=5 // pred_fallthru
        _
      %p1081 = scmp.le.s32.totalorder 2, %s20
      // Predicated region
      $region65: #{tpu_custom_call.1} parent=5 // pred_check
        %p1082 = pneg %p1081
      $region66: #{tpu_custom_call.1} parent=5 // pred_check_branch
        %1084 = sbr.rel (%p1082) target = $region68
      $region67: #{tpu_custom_call.1} parent=5 // pred_region
        %s1085 = ssub.s32 %s20, 2
        // Predicated region
        $region69: #{tpu_custom_call.1} parent=67 // pred_check
          %p1086 = pneg %p201
        $region70: #{tpu_custom_call.1} parent=67 // pred_check_branch
          %1088 = sbr.rel (%p1086) target = $region72
        $region71: #{tpu_custom_call.1} parent=67 // pred_region
          %s1089 = sand.u32 %s186, 1
          %s1090 = scalar_lea.sflag [#allocation4], %s1089
          %s1091 = sand.u32 %s186, 1
          %s1092 = smul.addr %s1091, 8
          %s1093 = scalar_lea.vmem [#allocation8], %s1092
          %1094 = dma.done %s1090, 128
        $region72: #{tpu_custom_call.1} parent=67 // pred_fallthru
          _
      $region68: #{tpu_custom_call.1} parent=5 // pred_fallthru
        _
    $region6: #{tpu_custom_call.1} parent=1 // loop_footer
      %s24 = sadd.s32 1, %s20
    $region7: #{tpu_custom_call.1} parent=1 // loop_footer_branch
      %19 = sbr.rel target = $region3
    $region8: #{tpu_custom_call.1} parent=1 // loop_exit
      _
    %1095 = vsyncpa [#allocation3], 1
    %s1096 = scalar_lea.sflag [#allocation3], 1
    %1097 = vsyncpa %s1096, 1
    %1098 = vsyncpa [#allocation6], 1
    %1099 = vsyncpa [#allocation4], 1
    %s1100 = scalar_lea.sflag [#allocation4], 1
    %1101 = vsyncpa %s1100, 1

</llo_original>
